<compile_context>
chip_gen: v6e
topology: v6e:2x2x1
jax: 0.10.0
libtpu: 0.0.40
codegen_flags: <defaults>
</compile_context>

<pallas_src>
import jax
import jax.numpy as jnp
from jax import lax
from jax.experimental import pallas as pl
from jax.experimental.pallas import tpu as pltpu

_FE_PAD = 128  # lane-dense edge-output feature width


# ----------------------------------------------------------------------------
# Fused kernel: edge MLP -> scatter-add aggregation -> node MLP -> global MLP
# ----------------------------------------------------------------------------
def _fused_meta_kernel(row_ref, col_ref, x_ref, e_ref,
                       we1r_ref, we1c_ref, we1e_ref, be1_ref, we2_ref, be2_ref,
                       wn1x_ref, wn1a_ref, bn1_ref, wn2_ref, bn2_ref,
                       wgu_ref, wgx_ref, bg_ref, u_ref,
                       e_out_ref, x_out_ref, u_out_ref,
                       agg_ref, xrp_ref, xcp_ref):
    i = pl.program_id(0)
    n_nodes = x_ref.shape[0]
    tile_e = e_ref.shape[0]

    @pl.when(i == 0)
    def _():
        agg_ref[...] = jnp.zeros_like(agg_ref)
        # Hoisted (associativity): x @ W1_row, x @ W1_col computed once,
        # reused by every edge tile.  Stored bf16 (MXU operand dtype).
        x_bf = x_ref[...]
        xrp_ref[...] = jnp.dot(x_bf, we1r_ref[...],
                               preferred_element_type=jnp.float32
                               ).astype(jnp.bfloat16)
        xcp_ref[...] = jnp.dot(x_bf, we1c_ref[...],
                               preferred_element_type=jnp.float32
                               ).astype(jnp.bfloat16)

    # --- per-tile one-hot selectors (bf16: exact 0/1, half the vregs) -------
    node_ids = lax.broadcasted_iota(jnp.int32, (n_nodes, tile_e), 0)
    onehot_r = (node_ids == row_ref[...]).astype(jnp.bfloat16)    # [N, tE]
    onehot_c = (node_ids == col_ref[...]).astype(jnp.bfloat16)    # [N, tE]

    # --- edge MLP, first layer: gather folded into projected x --------------
    gat = (((0,), (0,)), ((), ()))                                 # contract N
    h = (lax.dot_general(onehot_r, xrp_ref[...], gat,
                         preferred_element_type=jnp.float32)
         + lax.dot_general(onehot_c, xcp_ref[...], gat,
                           preferred_element_type=jnp.float32)
         + jnp.dot(e_ref[...], we1e_ref[...],
                   preferred_element_type=jnp.float32)
         + be1_ref[...])
    h = jnp.maximum(h, 0.0)                                        # f32 VPU

    # --- edge MLP, second layer (wEdgeC folded into we2/be2; lane-dense) ----
    e_out = (jnp.dot(h.astype(jnp.bfloat16), we2_ref[...],
                     preferred_element_type=jnp.float32) + be2_ref[...])
    e_out_ref[...] = e_out                                         # [tE, 128]

    # --- scatter-add onto destination nodes (resident scratch) --------------
    # padded edges have col == N -> their one-hot column is all zero.
    agg_ref[...] += jnp.dot(onehot_c, e_out.astype(jnp.bfloat16),
                            preferred_element_type=jnp.float32)

    # --- finalize: node MLP + global model on the last edge tile ------------
    @pl.when(i == pl.num_programs(0) - 1)
    def _():
        x_bf = x_ref[...]
        hn = (jnp.dot(x_bf, wn1x_ref[...], preferred_element_type=jnp.float32)
              + jnp.dot(agg_ref[...].astype(jnp.bfloat16), wn1a_ref[...],
                        preferred_element_type=jnp.float32)
              + bn1_ref[...])
        hn = jnp.maximum(hn, 0.0)
        # wn2/bn2 already scaled by wNodeC at trace time
        x_new = (jnp.dot(hn.astype(jnp.bfloat16), wn2_ref[...],
                         preferred_element_type=jnp.float32) + bn2_ref[...])
        x_out_ref[...] = x_new

        mean_x = jnp.mean(x_new, axis=0, keepdims=True)            # [1, Fx]
        u_new = (jnp.dot(u_ref[...], wgu_ref[...],
                         preferred_element_type=jnp.float32)
                 + jnp.dot(mean_x.astype(jnp.bfloat16), wgx_ref[...],
                           preferred_element_type=jnp.float32)
                 + bg_ref[...])
        u_out_ref[...] = jnp.maximum(u_new, 0.0)


def _full_spec(arr):
    # Whole-array block, VMEM-resident across the edge-tile grid.
    return pl.BlockSpec(arr.shape, lambda i: (0,) * arr.ndim)


def _default_tile_e():
    # v6e: 2x256 MXU + 128 MiB VMEM -> 256-wide edge tiles.
    # v5e (4x128 MXU) / v7x (64 MiB VMEM): keep 128.
    try:
        kind = jax.devices()[0].device_kind.lower()
    except Exception:
        return 128
    return 256 if "v6" in kind else 128


def _vmem_limit_bytes(resident_arrays, N, Fx, Fe, H, tile_e):
    # resident (constant index_map) inputs are double-buffered by default
    resident = 2 * sum(a.size * a.dtype.itemsize for a in resident_arrays)
    scratch = N * _FE_PAD * 4 + 2 * N * H * 2               # agg + projections
    out_res = N * Fx * 4 + _FE_PAD * 4                      # x_out / u_out blocks
    per_tile = 2 * (2 * tile_e * 4                           # row / col ids
                    + tile_e * Fe * 2                        # edge_attr (bf16)
                    + tile_e * _FE_PAD * 4)                  # e_out block
    live = 2 * N * tile_e * 2 + 2 * tile_e * H * 4 + tile_e * _FE_PAD * 4
    total = resident + scratch + out_res + per_tile + live
    return int(min(max(32 * 1024 * 1024, 2 * total), 64 * 1024 * 1024))


# ----------------------------------------------------------------------------
# MetaLayer: same forward semantics as the PyTorch module, fused on TPU
# ----------------------------------------------------------------------------
class MetaLayer:
    """GLAN MetaLayer with canonical 2-layer-MLP sub-models fused into one
    Pallas kernel (edge MLP -> scatter-agg -> node MLP -> global MLP)."""

    def __init__(self, edge_params, node_params, global_params, tile_e=None):
        self.pe = edge_params
        self.pn = node_params
        self.pg = global_params
        self.tile_e = _default_tile_e() if tile_e is None else tile_e

    def __call__(self, x, edge_index, edge_attr=None, u=None, batch=None,
                 wEdgeC=None, wNodeC=None):
        del batch  # single-graph pooling (batch unused, as in the reference)
        N, Fx = x.shape
        E, Fe = edge_attr.shape
        Fu = u.shape[1]
        H = self.pe["w1"].shape[1]

        wE = 1.0 if wEdgeC is None else wEdgeC
        wN = 1.0 if wNodeC is None else wNodeC

        bf16 = jnp.bfloat16
        x_bf = x.astype(bf16)
        u_bf = u.astype(bf16)
        ea_bf = edge_attr.astype(bf16)

        # ---- trace-time weight prep: split W1, fold scales, pad lanes ------
        # Matmul operands -> bf16; biases stay f32 (added to f32 accumulators).
        # NOTE: default MXU precision (bf16 passes) is used; pass
        # precision=lax.Precision.HIGHEST on the dots if tighter f32 accuracy
        # is ever required (3x MXU cost).
        pe, pn, pg = self.pe, self.pn, self.pg
        we1r = pe["w1"][:Fx].astype(bf16)
        we1c = pe["w1"][Fx:2 * Fx].astype(bf16)
        we1e = pe["w1"][2 * Fx:].astype(bf16)
        be1 = pe["b1"].astype(jnp.float32)
        # wEdgeC folded into W2/b2; output feature axis zero-padded to 128
        we2 = jnp.pad((pe["w2"] * wE).astype(bf16), ((0, 0), (0, _FE_PAD - Fe)))
        be2 = jnp.pad((pe["b2"] * wE).astype(jnp.float32),
                      ((0, 0), (0, _FE_PAD - Fe)))

        wn1x = pn["w1"][:Fx].astype(bf16)
        # agg carries the lane-padded edge features -> pad wn1a rows to match
        wn1a = jnp.pad(pn["w1"][Fx:].astype(bf16), ((0, _FE_PAD - Fe), (0, 0)))
        bn1 = pn["b1"].astype(jnp.float32)
        wn2 = (pn["w2"] * wN).astype(bf16)
        bn2 = (pn["b2"] * wN).astype(jnp.float32)

        wgu = pg["wg"][:Fu].astype(bf16)
        wgx = pg["wg"][Fu:].astype(bf16)
        bg = pg["bg"].astype(jnp.float32)

        # ---- pad edges to a multiple of the tile; pad ids with N (invalid) -
        tile_e = self.tile_e
        n_tiles = max(1, pl.cdiv(E, tile_e))      # E == 0 still runs finalize
        e_pad = n_tiles * tile_e
        pad = e_pad - E

        row = edge_index[0].astype(jnp.int32)
        col = edge_index[1].astype(jnp.int32)
        row_p = jnp.pad(row, (0, pad), constant_values=N).reshape(1, e_pad)
        col_p = jnp.pad(col, (0, pad), constant_values=N).reshape(1, e_pad)
        ea_p = jnp.pad(ea_bf, ((0, pad), (0, 0)))

        weights = (we1r, we1c, we1e, be1, we2, be2,
                   wn1x, wn1a, bn1, wn2, bn2,
                   wgu, wgx, bg, u_bf)

        in_specs = [
            pl.BlockSpec((1, tile_e), lambda i: (0, i)),        # row ids
            pl.BlockSpec((1, tile_e), lambda i: (0, i)),        # col ids
            _full_spec(x_bf),                                   # x (resident)
            pl.BlockSpec((tile_e, Fe), lambda i: (i, 0)),       # edge_attr
        ] + [_full_spec(w) for w in weights]

        out_shape = (
            jax.ShapeDtypeStruct((e_pad, _FE_PAD), jnp.float32),  # edge_attr'
            jax.ShapeDtypeStruct((N, Fx), jnp.float32),           # x'
            jax.ShapeDtypeStruct((1, Fu), jnp.float32),           # u'
        )
        out_specs = (
            pl.BlockSpec((tile_e, _FE_PAD), lambda i: (i, 0)),    # lane-dense
            pl.BlockSpec((N, Fx), lambda i: (0, 0)),
            pl.BlockSpec((1, Fu), lambda i: (0, 0)),
        )

        grid_spec = pltpu.PrefetchScalarGridSpec(
            num_scalar_prefetch=0,
            grid=(n_tiles,),
            in_specs=in_specs,
            out_specs=out_specs,
            scratch_shapes=[
                pltpu.VMEM((N, _FE_PAD), jnp.float32),   # agg accumulator
                pltpu.VMEM((N, H), bf16),                # x @ We1_row
                pltpu.VMEM((N, H), bf16),                # x @ We1_col
            ],
        )

        vmem_limit = _vmem_limit_bytes([x_bf, *weights], N, Fx, Fe, H, tile_e)

        e_out, x_out, u_out = pl.pallas_call(
            _fused_meta_kernel,
            out_shape=out_shape,
            grid_spec=grid_spec,
            compiler_params=pltpu.CompilerParams(
                # edge-tile axis carries the node accumulator -> reduction axis
                dimension_semantics=("arbitrary",),
                vmem_limit_bytes=vmem_limit,
            ),
        )(row_p, col_p, x_bf, ea_p, *weights)

        return x_out, e_out[:E, :Fe], u_out


# ----------------------------------------------------------------------------
# Deterministic parameter init + pure-JAX reference + example run
# ----------------------------------------------------------------------------
def init_params(key, Fx, Fe, H, Fu):
    ks = jax.random.split(key, 3)
    s = 0.1
    edge = dict(
        w1=s * jax.random.normal(ks[0], (2 * Fx + Fe, H), jnp.float32),
        b1=jnp.zeros((1, H), jnp.float32),
        w2=s * jax.random.normal(jax.random.fold_in(ks[0], 1), (H, Fe), jnp.float32),
        b2=jnp.zeros((1, Fe), jnp.float32))
    node = dict(
        w1=s * jax.random.normal(ks[1], (Fx + Fe, H), jnp.float32),
        b1=jnp.zeros((1, H), jnp.float32),
        w2=s * jax.random.normal(jax.random.fold_in(ks[1], 1), (H, Fx), jnp.float32),
        b2=jnp.zeros((1, Fx), jnp.float32))
    glob = dict(
        wg=s * jax.random.normal(ks[2], (Fu + Fx, Fu), jnp.float32),
        bg=jnp.zeros((1, Fu), jnp.float32))
    return edge, node, glob


def reference_forward(params, x, edge_index, edge_attr, u, wEdgeC, wNodeC):
    """Pure-JAX f32 reference mirroring the kernel math (sanity check)."""
    pe, pn, pg = params
    row, col = edge_index[0], edge_index[1]
    inp = jnp.concatenate([x[row], x[col], edge_attr], axis=-1)
    e = (jnp.maximum(inp @ pe["w1"] + pe["b1"], 0.0) @ pe["w2"] + pe["b2"]) * wEdgeC
    onehot = (jnp.arange(x.shape[0])[:, None] == col[None, :]).astype(jnp.float32)
    agg = onehot @ e
    inp2 = jnp.concatenate([x, agg], axis=-1)
    xn = (jnp.maximum(inp2 @ pn["w1"] + pn["b1"], 0.0) @ pn["w2"] + pn["b2"]) * wNodeC
    un = jnp.maximum(
        jnp.concatenate([u, jnp.mean(xn, axis=0, keepdims=True)], axis=-1)
        @ pg["wg"] + pg["bg"], 0.0)
    return xn, e, un


if __name__ == "__main__":
    N, E, Fx, Fe, H, Fu = 8, 16, 32, 16, 32, 8

    key = jax.random.PRNGKey(0)
    k_x, k_e, k_row, k_col, k_u, k_p = jax.random.split(key, 6)

    x = jax.random.normal(k_x, (N, Fx), jnp.float32)
    edge_attr = jax.random.normal(k_e, (E, Fe), jnp.float32)
    row = jax.random.randint(k_row, (E,), 0, N, jnp.int32)
    col = jax.random.randint(k_col, (E,), 0, N, jnp.int32)
    edge_index = jnp.stack([row, col], axis=0)          # [2, E]
    u = jax.random.normal(k_u, (1, Fu), jnp.float32)
    batch = jnp.zeros((N,), jnp.int32)                  # single graph
    wEdgeC, wNodeC = 0.5, 2.0

    params = init_params(k_p, Fx, Fe, H, Fu)
    layer = MetaLayer(edge_params=params[0],
                      node_params=params[1],
                      global_params=params[2])

    x_out, e_out, u_out = layer(x, edge_index, edge_attr, u, batch,
                                wEdgeC=wEdgeC, wNodeC=wNodeC)
    jax.block_until_ready((x_out, e_out, u_out))

    # sanity check against pure-JAX reference (bf16 MXU operands -> loose tol)
    x_ref, e_ref, u_ref = reference_forward(params, x, edge_index, edge_attr,
                                            u, wEdgeC, wNodeC)
    assert x_out.shape == (N, Fx) and e_out.shape == (E, Fe) and u_out.shape == (1, Fu)
    assert jnp.allclose(x_out, x_ref, rtol=2e-2, atol=2e-2)
    assert jnp.allclose(e_out, e_ref, rtol=2e-2, atol=2e-2)
    assert jnp.allclose(u_out, u_ref, rtol=2e-2, atol=2e-2)

    print("KERNEL_OK")
</pallas_src>

<mosaic_0001>
module attributes {stable_mosaic.version = 11 : i64} {
  func.func @_fused_meta_kernel(%arg0: i32, %arg1: memref<1x128xi32, #tpu.memory_space<vmem>>, %arg2: memref<1x128xi32, #tpu.memory_space<vmem>>, %arg3: memref<8x32xbf16, #tpu.memory_space<vmem>>, %arg4: memref<128x16xbf16, #tpu.memory_space<vmem>>, %arg5: memref<32x32xbf16, #tpu.memory_space<vmem>>, %arg6: memref<32x32xbf16, #tpu.memory_space<vmem>>, %arg7: memref<16x32xbf16, #tpu.memory_space<vmem>>, %arg8: memref<1x32xf32, #tpu.memory_space<vmem>>, %arg9: memref<32x128xbf16, #tpu.memory_space<vmem>>, %arg10: memref<1x128xf32, #tpu.memory_space<vmem>>, %arg11: memref<32x32xbf16, #tpu.memory_space<vmem>>, %arg12: memref<128x32xbf16, #tpu.memory_space<vmem>>, %arg13: memref<1x32xf32, #tpu.memory_space<vmem>>, %arg14: memref<32x32xbf16, #tpu.memory_space<vmem>>, %arg15: memref<1x32xf32, #tpu.memory_space<vmem>>, %arg16: memref<8x8xbf16, #tpu.memory_space<vmem>>, %arg17: memref<32x8xbf16, #tpu.memory_space<vmem>>, %arg18: memref<1x8xf32, #tpu.memory_space<vmem>>, %arg19: memref<1x8xbf16, #tpu.memory_space<vmem>>, %arg20: memref<128x128xf32, #tpu.memory_space<vmem>>, %arg21: memref<8x32xf32, #tpu.memory_space<vmem>>, %arg22: memref<1x8xf32, #tpu.memory_space<vmem>>, %arg23: memref<8x128xf32, #tpu.memory_space<vmem>>, %arg24: memref<8x32xbf16, #tpu.memory_space<vmem>>, %arg25: memref<8x32xbf16, #tpu.memory_space<vmem>>) attributes {dimension_semantics = [#tpu.dimension_semantics<arbitrary>], iteration_bounds = array<i64: 1>, scalar_prefetch = 0 : i64, scratch_operands = 3 : i64, tpu.core_type = #tpu.core_type<tc>, window_params = [{transform_indices = @transform_0, window_bounds = array<i64: 1, 128>}, {transform_indices = @transform_1, window_bounds = array<i64: 1, 128>}, {pipeline_mode = #tpu.pipeline_mode<synchronous>, transform_indices = @transform_2, window_bounds = array<i64: 8, 32>}, {transform_indices = @transform_3, window_bounds = array<i64: 128, 16>}, {pipeline_mode = #tpu.pipeline_mode<synchronous>, transform_indices = @transform_4, window_bounds = array<i64: 32, 32>}, {pipeline_mode = #tpu.pipeline_mode<synchronous>, transform_indices = @transform_5, window_bounds = array<i64: 32, 32>}, {pipeline_mode = #tpu.pipeline_mode<synchronous>, transform_indices = @transform_6, window_bounds = array<i64: 16, 32>}, {pipeline_mode = #tpu.pipeline_mode<synchronous>, transform_indices = @transform_7, window_bounds = array<i64: 1, 32>}, {pipeline_mode = #tpu.pipeline_mode<synchronous>, transform_indices = @transform_8, window_bounds = array<i64: 32, 128>}, {pipeline_mode = #tpu.pipeline_mode<synchronous>, transform_indices = @transform_9, window_bounds = array<i64: 1, 128>}, {pipeline_mode = #tpu.pipeline_mode<synchronous>, transform_indices = @transform_10, window_bounds = array<i64: 32, 32>}, {pipeline_mode = #tpu.pipeline_mode<synchronous>, transform_indices = @transform_11, window_bounds = array<i64: 128, 32>}, {pipeline_mode = #tpu.pipeline_mode<synchronous>, transform_indices = @transform_12, window_bounds = array<i64: 1, 32>}, {pipeline_mode = #tpu.pipeline_mode<synchronous>, transform_indices = @transform_13, window_bounds = array<i64: 32, 32>}, {pipeline_mode = #tpu.pipeline_mode<synchronous>, transform_indices = @transform_14, window_bounds = array<i64: 1, 32>}, {pipeline_mode = #tpu.pipeline_mode<synchronous>, transform_indices = @transform_15, window_bounds = array<i64: 8, 8>}, {pipeline_mode = #tpu.pipeline_mode<synchronous>, transform_indices = @transform_16, window_bounds = array<i64: 32, 8>}, {pipeline_mode = #tpu.pipeline_mode<synchronous>, transform_indices = @transform_17, window_bounds = array<i64: 1, 8>}, {pipeline_mode = #tpu.pipeline_mode<synchronous>, transform_indices = @transform_18, window_bounds = array<i64: 1, 8>}, {transform_indices = @transform_19, window_bounds = array<i64: 128, 128>}, {pipeline_mode = #tpu.pipeline_mode<synchronous>, transform_indices = @transform_20, window_bounds = array<i64: 8, 32>}, {pipeline_mode = #tpu.pipeline_mode<synchronous>, transform_indices = @transform_21, window_bounds = array<i64: 1, 8>}]} {
    %c0_i32 = arith.constant 0 : i32
    %0 = arith.cmpi eq, %arg0, %c0_i32 : i32
    %1 = arith.extui %0 : i1 to i32
    %c0_i32_0 = arith.constant 0 : i32
    %2 = arith.cmpi ne, %1, %c0_i32_0 : i32
    scf.if %2 {
      %cst_31 = arith.constant 0.000000e+00 : f32
      %45 = vector.broadcast %cst_31 : f32 to vector<8x128xf32>
      %c0_32 = arith.constant 0 : index
      %c0_33 = arith.constant 0 : index
      %46 = vector.load %arg23[%c0_32, %c0_33] : memref<8x128xf32, #tpu.memory_space<vmem>>, vector<8x128xf32>
      tpu.vector_store %arg23[%c0_32, %c0_33], %45 {strides = array<i32>} : memref<8x128xf32, #tpu.memory_space<vmem>>, vector<8x128xf32>,
      %c0_34 = arith.constant 0 : index
      %c0_35 = arith.constant 0 : index
      %47 = vector.load %arg3[%c0_34, %c0_35] : memref<8x32xbf16, #tpu.memory_space<vmem>>, vector<8x32xbf16>
      %c0_36 = arith.constant 0 : index
      %c0_37 = arith.constant 0 : index
      %48 = vector.load %arg5[%c0_36, %c0_37] : memref<32x32xbf16, #tpu.memory_space<vmem>>, vector<32x32xbf16>
      %cst_38 = arith.constant dense<0.000000e+00> : vector<8x32xf32>
      %49 = tpu.matmul %47, %48, %cst_38 {dimension_numbers = #tpu.dot_dimension_numbers<[1], [0], [0], [1], [0, 0, 1, 1], [], []>} : vector<8x32xbf16>, vector<32x32xbf16>, vector<8x32xf32> -> vector<8x32xf32>
      %50 = arith.truncf %49 : vector<8x32xf32> to vector<8x32xbf16>
      %c0_39 = arith.constant 0 : index
      %c0_40 = arith.constant 0 : index
      %51 = vector.load %arg24[%c0_39, %c0_40] : memref<8x32xbf16, #tpu.memory_space<vmem>>, vector<8x32xbf16>
      tpu.vector_store %arg24[%c0_39, %c0_40], %50 {strides = array<i32>} : memref<8x32xbf16, #tpu.memory_space<vmem>>, vector<8x32xbf16>,
      %c0_41 = arith.constant 0 : index
      %c0_42 = arith.constant 0 : index
      %52 = vector.load %arg6[%c0_41, %c0_42] : memref<32x32xbf16, #tpu.memory_space<vmem>>, vector<32x32xbf16>
      %cst_43 = arith.constant dense<0.000000e+00> : vector<8x32xf32>
      %53 = tpu.matmul %47, %52, %cst_43 {dimension_numbers = #tpu.dot_dimension_numbers<[1], [0], [0], [1], [0, 0, 1, 1], [], []>} : vector<8x32xbf16>, vector<32x32xbf16>, vector<8x32xf32> -> vector<8x32xf32>
      %54 = arith.truncf %53 : vector<8x32xf32> to vector<8x32xbf16>
      %c0_44 = arith.constant 0 : index
      %c0_45 = arith.constant 0 : index
      %55 = vector.load %arg25[%c0_44, %c0_45] : memref<8x32xbf16, #tpu.memory_space<vmem>>, vector<8x32xbf16>
      tpu.vector_store %arg25[%c0_44, %c0_45], %54 {strides = array<i32>} : memref<8x32xbf16, #tpu.memory_space<vmem>>, vector<8x32xbf16>,
    } else {
    }
    %3 = tpu.iota {dimensions = array<i32: 0>} : vector<8x128xi32>
    %c0 = arith.constant 0 : index
    %c0_1 = arith.constant 0 : index
    %4 = vector.load %arg1[%c0, %c0_1] : memref<1x128xi32, #tpu.memory_space<vmem>>, vector<1x128xi32>
    %5 = vector.broadcast %4 : vector<1x128xi32> to vector<8x128xi32>
    %6 = arith.cmpi eq, %3, %5 : vector<8x128xi32>
    %7 = arith.extui %6 : vector<8x128xi1> to vector<8x128xi32>
    %8 = arith.sitofp %7 : vector<8x128xi32> to vector<8x128xf32>
    %9 = arith.truncf %8 : vector<8x128xf32> to vector<8x128xbf16>
    %c0_2 = arith.constant 0 : index
    %c0_3 = arith.constant 0 : index
    %10 = vector.load %arg2[%c0_2, %c0_3] : memref<1x128xi32, #tpu.memory_space<vmem>>, vector<1x128xi32>
    %11 = vector.broadcast %10 : vector<1x128xi32> to vector<8x128xi32>
    %12 = arith.cmpi eq, %3, %11 : vector<8x128xi32>
    %13 = arith.extui %12 : vector<8x128xi1> to vector<8x128xi32>
    %14 = arith.sitofp %13 : vector<8x128xi32> to vector<8x128xf32>
    %15 = arith.truncf %14 : vector<8x128xf32> to vector<8x128xbf16>
    %c0_4 = arith.constant 0 : index
    %c0_5 = arith.constant 0 : index
    %16 = vector.load %arg24[%c0_4, %c0_5] : memref<8x32xbf16, #tpu.memory_space<vmem>>, vector<8x32xbf16>
    %cst = arith.constant dense<0.000000e+00> : vector<128x32xf32>
    %17 = tpu.matmul %9, %16, %cst {dimension_numbers = #tpu.dot_dimension_numbers<[0], [0], [1], [1], [0, 1, 1, 1], [], []>} : vector<8x128xbf16>, vector<8x32xbf16>, vector<128x32xf32> -> vector<128x32xf32>
    %c0_6 = arith.constant 0 : index
    %c0_7 = arith.constant 0 : index
    %18 = vector.load %arg25[%c0_6, %c0_7] : memref<8x32xbf16, #tpu.memory_space<vmem>>, vector<8x32xbf16>
    %cst_8 = arith.constant dense<0.000000e+00> : vector<128x32xf32>
    %19 = tpu.matmul %15, %18, %cst_8 {dimension_numbers = #tpu.dot_dimension_numbers<[0], [0], [1], [1], [0, 1, 1, 1], [], []>} : vector<8x128xbf16>, vector<8x32xbf16>, vector<128x32xf32> -> vector<128x32xf32>
    %20 = arith.addf %17, %19 : vector<128x32xf32>
    %c0_9 = arith.constant 0 : index
    %c0_10 = arith.constant 0 : index
    %21 = vector.load %arg4[%c0_9, %c0_10] : memref<128x16xbf16, #tpu.memory_space<vmem>>, vector<128x16xbf16>
    %c0_11 = arith.constant 0 : index
    %c0_12 = arith.constant 0 : index
    %22 = vector.load %arg7[%c0_11, %c0_12] : memref<16x32xbf16, #tpu.memory_space<vmem>>, vector<16x32xbf16>
    %cst_13 = arith.constant dense<0.000000e+00> : vector<128x32xf32>
    %23 = tpu.matmul %21, %22, %cst_13 {dimension_numbers = #tpu.dot_dimension_numbers<[1], [0], [0], [1], [0, 0, 1, 1], [], []>} : vector<128x16xbf16>, vector<16x32xbf16>, vector<128x32xf32> -> vector<128x32xf32>
    %24 = arith.addf %20, %23 : vector<128x32xf32>
    %c0_14 = arith.constant 0 : index
    %c0_15 = arith.constant 0 : index
    %25 = vector.load %arg8[%c0_14, %c0_15] : memref<1x32xf32, #tpu.memory_space<vmem>>, vector<1x32xf32>
    %26 = vector.broadcast %25 : vector<1x32xf32> to vector<128x32xf32>
    %27 = arith.addf %24, %26 : vector<128x32xf32>
    %cst_16 = arith.constant 0.000000e+00 : f32
    %28 = vector.broadcast %cst_16 : f32 to vector<128x32xf32>
    %29 = arith.maximumf %27, %28 : vector<128x32xf32>
    %30 = arith.truncf %29 : vector<128x32xf32> to vector<128x32xbf16>
    %c0_17 = arith.constant 0 : index
    %c0_18 = arith.constant 0 : index
    %31 = vector.load %arg9[%c0_17, %c0_18] : memref<32x128xbf16, #tpu.memory_space<vmem>>, vector<32x128xbf16>
    %cst_19 = arith.constant dense<0.000000e+00> : vector<128x128xf32>
    %32 = tpu.matmul %30, %31, %cst_19 {dimension_numbers = #tpu.dot_dimension_numbers<[1], [0], [0], [1], [0, 0, 1, 1], [], []>} : vector<128x32xbf16>, vector<32x128xbf16>, vector<128x128xf32> -> vector<128x128xf32>
    %c0_20 = arith.constant 0 : index
    %c0_21 = arith.constant 0 : index
    %33 = vector.load %arg10[%c0_20, %c0_21] : memref<1x128xf32, #tpu.memory_space<vmem>>, vector<1x128xf32>
    %34 = vector.broadcast %33 : vector<1x128xf32> to vector<128x128xf32>
    %35 = arith.addf %32, %34 : vector<128x128xf32>
    %c0_22 = arith.constant 0 : index
    %c0_23 = arith.constant 0 : index
    %36 = vector.load %arg20[%c0_22, %c0_23] : memref<128x128xf32, #tpu.memory_space<vmem>>, vector<128x128xf32>
    tpu.vector_store %arg20[%c0_22, %c0_23], %35 {strides = array<i32>} : memref<128x128xf32, #tpu.memory_space<vmem>>, vector<128x128xf32>,
    %c0_24 = arith.constant 0 : index
    %c0_25 = arith.constant 0 : index
    %37 = vector.load %arg23[%c0_24, %c0_25] : memref<8x128xf32, #tpu.memory_space<vmem>>, vector<8x128xf32>
    %38 = arith.truncf %35 : vector<128x128xf32> to vector<128x128xbf16>
    %cst_26 = arith.constant dense<0.000000e+00> : vector<8x128xf32>
    %39 = tpu.matmul %15, %38, %cst_26 {dimension_numbers = #tpu.dot_dimension_numbers<[1], [0], [0], [1], [0, 0, 1, 1], [], []>} : vector<8x128xbf16>, vector<128x128xbf16>, vector<8x128xf32> -> vector<8x128xf32>
    %40 = arith.addf %37, %39 : vector<8x128xf32>
    %c0_27 = arith.constant 0 : index
    %c0_28 = arith.constant 0 : index
    %41 = vector.load %arg23[%c0_27, %c0_28] : memref<8x128xf32, #tpu.memory_space<vmem>>, vector<8x128xf32>
    tpu.vector_store %arg23[%c0_27, %c0_28], %40 {strides = array<i32>} : memref<8x128xf32, #tpu.memory_space<vmem>>, vector<8x128xf32>,
    %c0_i32_29 = arith.constant 0 : i32
    %42 = arith.cmpi eq, %arg0, %c0_i32_29 : i32
    %43 = arith.extui %42 : i1 to i32
    %c0_i32_30 = arith.constant 0 : i32
    %44 = arith.cmpi ne, %43, %c0_i32_30 : i32
    scf.if %44 {
      %c0_31 = arith.constant 0 : index
      %c0_32 = arith.constant 0 : index
      %45 = vector.load %arg3[%c0_31, %c0_32] : memref<8x32xbf16, #tpu.memory_space<vmem>>, vector<8x32xbf16>
      %c0_33 = arith.constant 0 : index
      %c0_34 = arith.constant 0 : index
      %46 = vector.load %arg11[%c0_33, %c0_34] : memref<32x32xbf16, #tpu.memory_space<vmem>>, vector<32x32xbf16>
      %cst_35 = arith.constant dense<0.000000e+00> : vector<8x32xf32>
      %47 = tpu.matmul %45, %46, %cst_35 {dimension_numbers = #tpu.dot_dimension_numbers<[1], [0], [0], [1], [0, 0, 1, 1], [], []>} : vector<8x32xbf16>, vector<32x32xbf16>, vector<8x32xf32> -> vector<8x32xf32>
      %c0_36 = arith.constant 0 : index
      %c0_37 = arith.constant 0 : index
      %48 = vector.load %arg23[%c0_36, %c0_37] : memref<8x128xf32, #tpu.memory_space<vmem>>, vector<8x128xf32>
      %49 = arith.truncf %48 : vector<8x128xf32> to vector<8x128xbf16>
      %c0_38 = arith.constant 0 : index
      %c0_39 = arith.constant 0 : index
      %50 = vector.load %arg12[%c0_38, %c0_39] : memref<128x32xbf16, #tpu.memory_space<vmem>>, vector<128x32xbf16>
      %cst_40 = arith.constant dense<0.000000e+00> : vector<8x32xf32>
      %51 = tpu.matmul %49, %50, %cst_40 {dimension_numbers = #tpu.dot_dimension_numbers<[1], [0], [0], [1], [0, 0, 1, 1], [], []>} : vector<8x128xbf16>, vector<128x32xbf16>, vector<8x32xf32> -> vector<8x32xf32>
      %52 = arith.addf %47, %51 : vector<8x32xf32>
      %c0_41 = arith.constant 0 : index
      %c0_42 = arith.constant 0 : index
      %53 = vector.load %arg13[%c0_41, %c0_42] : memref<1x32xf32, #tpu.memory_space<vmem>>, vector<1x32xf32>
      %54 = vector.broadcast %53 : vector<1x32xf32> to vector<8x32xf32>
      %55 = arith.addf %52, %54 : vector<8x32xf32>
      %cst_43 = arith.constant 0.000000e+00 : f32
      %56 = vector.broadcast %cst_43 : f32 to vector<8x32xf32>
      %57 = arith.maximumf %55, %56 : vector<8x32xf32>
      %58 = arith.truncf %57 : vector<8x32xf32> to vector<8x32xbf16>
      %c0_44 = arith.constant 0 : index
      %c0_45 = arith.constant 0 : index
      %59 = vector.load %arg14[%c0_44, %c0_45] : memref<32x32xbf16, #tpu.memory_space<vmem>>, vector<32x32xbf16>
      %cst_46 = arith.constant dense<0.000000e+00> : vector<8x32xf32>
      %60 = tpu.matmul %58, %59, %cst_46 {dimension_numbers = #tpu.dot_dimension_numbers<[1], [0], [0], [1], [0, 0, 1, 1], [], []>} : vector<8x32xbf16>, vector<32x32xbf16>, vector<8x32xf32> -> vector<8x32xf32>
      %c0_47 = arith.constant 0 : index
      %c0_48 = arith.constant 0 : index
      %61 = vector.load %arg15[%c0_47, %c0_48] : memref<1x32xf32, #tpu.memory_space<vmem>>, vector<1x32xf32>
      %62 = vector.broadcast %61 : vector<1x32xf32> to vector<8x32xf32>
      %63 = arith.addf %60, %62 : vector<8x32xf32>
      %c0_49 = arith.constant 0 : index
      %c0_50 = arith.constant 0 : index
      %64 = vector.load %arg21[%c0_49, %c0_50] : memref<8x32xf32, #tpu.memory_space<vmem>>, vector<8x32xf32>
      tpu.vector_store %arg21[%c0_49, %c0_50], %63 {strides = array<i32>} : memref<8x32xf32, #tpu.memory_space<vmem>>, vector<8x32xf32>,
      %cst_51 = arith.constant dense<0.000000e+00> : vector<32xf32>
      %65 = vector.multi_reduction <add>, %63, %cst_51 [0] : vector<8x32xf32> to vector<32xf32>
      %66 = vector.shape_cast %65 : vector<32xf32> to vector<1x32xf32>
      %cst_52 = arith.constant 8.000000e+00 : f32
      %67 = vector.broadcast %cst_52 : f32 to vector<1x32xf32>
      %68 = arith.divf %66, %67 : vector<1x32xf32>
      %c0_53 = arith.constant 0 : index
      %c0_54 = arith.constant 0 : index
      %69 = vector.load %arg19[%c0_53, %c0_54] : memref<1x8xbf16, #tpu.memory_space<vmem>>, vector<1x8xbf16>
      %c0_55 = arith.constant 0 : index
      %c0_56 = arith.constant 0 : index
      %70 = vector.load %arg16[%c0_55, %c0_56] : memref<8x8xbf16, #tpu.memory_space<vmem>>, vector<8x8xbf16>
      %cst_57 = arith.constant dense<0.000000e+00> : vector<1x8xf32>
      %71 = tpu.matmul %69, %70, %cst_57 {dimension_numbers = #tpu.dot_dimension_numbers<[1], [0], [0], [1], [0, 0, 1, 1], [], []>} : vector<1x8xbf16>, vector<8x8xbf16>, vector<1x8xf32> -> vector<1x8xf32>
      %72 = arith.truncf %68 : vector<1x32xf32> to vector<1x32xbf16>
      %c0_58 = arith.constant 0 : index
      %c0_59 = arith.constant 0 : index
      %73 = vector.load %arg17[%c0_58, %c0_59] : memref<32x8xbf16, #tpu.memory_space<vmem>>, vector<32x8xbf16>
      %cst_60 = arith.constant dense<0.000000e+00> : vector<1x8xf32>
      %74 = tpu.matmul %72, %73, %cst_60 {dimension_numbers = #tpu.dot_dimension_numbers<[1], [0], [0], [1], [0, 0, 1, 1], [], []>} : vector<1x32xbf16>, vector<32x8xbf16>, vector<1x8xf32> -> vector<1x8xf32>
      %75 = arith.addf %71, %74 : vector<1x8xf32>
      %c0_61 = arith.constant 0 : index
      %c0_62 = arith.constant 0 : index
      %76 = vector.load %arg18[%c0_61, %c0_62] : memref<1x8xf32, #tpu.memory_space<vmem>>, vector<1x8xf32>
      %77 = arith.addf %75, %76 : vector<1x8xf32>
      %cst_63 = arith.constant 0.000000e+00 : f32
      %78 = vector.broadcast %cst_63 : f32 to vector<1x8xf32>
      %79 = arith.maximumf %77, %78 : vector<1x8xf32>
      %c0_64 = arith.constant 0 : index
      %c0_65 = arith.constant 0 : index
      %80 = vector.load %arg22[%c0_64, %c0_65] : memref<1x8xf32, #tpu.memory_space<vmem>>, vector<1x8xf32>
      tpu.vector_store %arg22[%c0_64, %c0_65], %79 {strides = array<i32>} : memref<1x8xf32, #tpu.memory_space<vmem>>, vector<1x8xf32>,
    } else {
    }
    return
  }
  func.func @transform_0(%arg0: i32) -> (i32, i32) {
    %c0_i32 = arith.constant 0 : i32
    %c0_i32_0 = arith.constant 0 : i32
    return %c0_i32, %arg0 : i32, i32
  }
  func.func @transform_1(%arg0: i32) -> (i32, i32) {
    %c0_i32 = arith.constant 0 : i32
    %c0_i32_0 = arith.constant 0 : i32
    return %c0_i32, %arg0 : i32, i32
  }
  func.func @transform_2(%arg0: i32) -> (i32, i32) {
    %c0_i32 = arith.constant 0 : i32
    %c0_i32_0 = arith.constant 0 : i32
    %c0_i32_1 = arith.constant 0 : i32
    return %c0_i32, %c0_i32_0 : i32, i32
  }
  func.func @transform_3(%arg0: i32) -> (i32, i32) {
    %c0_i32 = arith.constant 0 : i32
    %c0_i32_0 = arith.constant 0 : i32
    return %arg0, %c0_i32 : i32, i32
  }
  func.func @transform_4(%arg0: i32) -> (i32, i32) {
    %c0_i32 = arith.constant 0 : i32
    %c0_i32_0 = arith.constant 0 : i32
    %c0_i32_1 = arith.constant 0 : i32
    return %c0_i32, %c0_i32_0 : i32, i32
  }
  func.func @transform_5(%arg0: i32) -> (i32, i32) {
    %c0_i32 = arith.constant 0 : i32
    %c0_i32_0 = arith.constant 0 : i32
    %c0_i32_1 = arith.constant 0 : i32
    return %c0_i32, %c0_i32_0 : i32, i32
  }
  func.func @transform_6(%arg0: i32) -> (i32, i32) {
    %c0_i32 = arith.constant 0 : i32
    %c0_i32_0 = arith.constant 0 : i32
    %c0_i32_1 = arith.constant 0 : i32
    return %c0_i32, %c0_i32_0 : i32, i32
  }
  func.func @transform_7(%arg0: i32) -> (i32, i32) {
    %c0_i32 = arith.constant 0 : i32
    %c0_i32_0 = arith.constant 0 : i32
    %c0_i32_1 = arith.constant 0 : i32
    return %c0_i32, %c0_i32_0 : i32, i32
  }
  func.func @transform_8(%arg0: i32) -> (i32, i32) {
    %c0_i32 = arith.constant 0 : i32
    %c0_i32_0 = arith.constant 0 : i32
    %c0_i32_1 = arith.constant 0 : i32
    return %c0_i32, %c0_i32_0 : i32, i32
  }
  func.func @transform_9(%arg0: i32) -> (i32, i32) {
    %c0_i32 = arith.constant 0 : i32
    %c0_i32_0 = arith.constant 0 : i32
    %c0_i32_1 = arith.constant 0 : i32
    return %c0_i32, %c0_i32_0 : i32, i32
  }
  func.func @transform_10(%arg0: i32) -> (i32, i32) {
    %c0_i32 = arith.constant 0 : i32
    %c0_i32_0 = arith.constant 0 : i32
    %c0_i32_1 = arith.constant 0 : i32
    return %c0_i32, %c0_i32_0 : i32, i32
  }
  func.func @transform_11(%arg0: i32) -> (i32, i32) {
    %c0_i32 = arith.constant 0 : i32
    %c0_i32_0 = arith.constant 0 : i32
    %c0_i32_1 = arith.constant 0 : i32
    return %c0_i32, %c0_i32_0 : i32, i32
  }
  func.func @transform_12(%arg0: i32) -> (i32, i32) {
    %c0_i32 = arith.constant 0 : i32
    %c0_i32_0 = arith.constant 0 : i32
    %c0_i32_1 = arith.constant 0 : i32
    return %c0_i32, %c0_i32_0 : i32, i32
  }
  func.func @transform_13(%arg0: i32) -> (i32, i32) {
    %c0_i32 = arith.constant 0 : i32
    %c0_i32_0 = arith.constant 0 : i32
    %c0_i32_1 = arith.constant 0 : i32
    return %c0_i32, %c0_i32_0 : i32, i32
  }
  func.func @transform_14(%arg0: i32) -> (i32, i32) {
    %c0_i32 = arith.constant 0 : i32
    %c0_i32_0 = arith.constant 0 : i32
    %c0_i32_1 = arith.constant 0 : i32
    return %c0_i32, %c0_i32_0 : i32, i32
  }
  func.func @transform_15(%arg0: i32) -> (i32, i32) {
    %c0_i32 = arith.constant 0 : i32
    %c0_i32_0 = arith.constant 0 : i32
    %c0_i32_1 = arith.constant 0 : i32
    return %c0_i32, %c0_i32_0 : i32, i32
  }
  func.func @transform_16(%arg0: i32) -> (i32, i32) {
    %c0_i32 = arith.constant 0 : i32
    %c0_i32_0 = arith.constant 0 : i32
    %c0_i32_1 = arith.constant 0 : i32
    return %c0_i32, %c0_i32_0 : i32, i32
  }
  func.func @transform_17(%arg0: i32) -> (i32, i32) {
    %c0_i32 = arith.constant 0 : i32
    %c0_i32_0 = arith.constant 0 : i32
    %c0_i32_1 = arith.constant 0 : i32
    return %c0_i32, %c0_i32_0 : i32, i32
  }
  func.func @transform_18(%arg0: i32) -> (i32, i32) {
    %c0_i32 = arith.constant 0 : i32
    %c0_i32_0 = arith.constant 0 : i32
    %c0_i32_1 = arith.constant 0 : i32
    return %c0_i32, %c0_i32_0 : i32, i32
  }
  func.func @transform_19(%arg0: i32) -> (i32, i32) {
    %c0_i32 = arith.constant 0 : i32
    %c0_i32_0 = arith.constant 0 : i32
    return %arg0, %c0_i32 : i32, i32
  }
  func.func @transform_20(%arg0: i32) -> (i32, i32) {
    %c0_i32 = arith.constant 0 : i32
    %c0_i32_0 = arith.constant 0 : i32
    %c0_i32_1 = arith.constant 0 : i32
    return %c0_i32, %c0_i32_0 : i32, i32
  }
  func.func @transform_21(%arg0: i32) -> (i32, i32) {
    %c0_i32 = arith.constant 0 : i32
    %c0_i32_0 = arith.constant 0 : i32
    %c0_i32_1 = arith.constant 0 : i32
    return %c0_i32, %c0_i32_0 : i32, i32
  }
}

</mosaic_0001>

<llo_original>
// kernel: tpu_custom_call.1
$region0: #{tpu_custom_call.1}
  #allocation0 [shape = 'u32[]', space=smem, size = 0x4, offset = 0x4, fixed_abs, tag = 'smem constant byte address 0x4 - core index']
  #allocation1 [shape = 'u32[144,128]{1,0:T(1,128)}', space=vmem, size = 0x12000, scoped, tag = 'internal scratch']
  #allocation2 [shape = 'f32[8,128]{1,0:T(8,128)}', space=vmem, size = 0x1000, scoped, tag = 'scratch operand']
  #allocation3 [shape = 'bf16[8,32]{1,0:T(8,128)(2,1)}', space=vmem, size = 0x800, scoped, tag = 'scratch operand']
  #allocation4 [shape = 'bf16[8,32]{1,0:T(8,128)(2,1)}', space=vmem, size = 0x800, scoped, tag = 'scratch operand']
  %s0 = inlined_call_operand.vmem [shape: s32[1,128], index: 0, kind: input, shape index: {}]
  %s1 = inlined_call_operand.vmem [shape: s32[1,128], index: 1, kind: input, shape index: {}]
  %s2 = inlined_call_operand.vmem [shape: bf16[8,32], index: 2, kind: input, shape index: {}]
  %s3 = inlined_call_operand.vmem [shape: bf16[128,16], index: 3, kind: input, shape index: {}]
  %s4 = inlined_call_operand.vmem [shape: bf16[32,32], index: 4, kind: input, shape index: {}]
  %s5 = inlined_call_operand.vmem [shape: bf16[32,32], index: 5, kind: input, shape index: {}]
  %s6 = inlined_call_operand.vmem [shape: bf16[16,32], index: 6, kind: input, shape index: {}]
  %s7 = inlined_call_operand.vmem [shape: f32[1,32], index: 7, kind: input, shape index: {}]
  %s8 = inlined_call_operand.vmem [shape: bf16[32,128], index: 8, kind: input, shape index: {}]
  %s9 = inlined_call_operand.vmem [shape: f32[1,128], index: 9, kind: input, shape index: {}]
  %s10 = inlined_call_operand.vmem [shape: bf16[32,32], index: 10, kind: input, shape index: {}]
  %s11 = inlined_call_operand.vmem [shape: bf16[128,32], index: 11, kind: input, shape index: {}]
  %s12 = inlined_call_operand.vmem [shape: f32[1,32], index: 12, kind: input, shape index: {}]
  %s13 = inlined_call_operand.vmem [shape: bf16[32,32], index: 13, kind: input, shape index: {}]
  %s14 = inlined_call_operand.vmem [shape: f32[1,32], index: 14, kind: input, shape index: {}]
  %s15 = inlined_call_operand.vmem [shape: bf16[8,8], index: 15, kind: input, shape index: {}]
  %s16 = inlined_call_operand.vmem [shape: bf16[32,8], index: 16, kind: input, shape index: {}]
  %s17 = inlined_call_operand.vmem [shape: f32[1,8], index: 17, kind: input, shape index: {}]
  %s18 = inlined_call_operand.vmem [shape: bf16[1,8], index: 18, kind: input, shape index: {}]
  %s19 = inlined_call_operand.hbm [shape: f32[128,128], index: 19, kind: output, shape index: {0}]
  %s20 = inlined_call_operand.hbm [shape: f32[8,32], index: 20, kind: output, shape index: {1}]
  %s21 = inlined_call_operand.hbm [shape: f32[1,8], index: 21, kind: output, shape index: {2}]
  %22 = xla_tuple %s19, %s20, %s21
  %s23 = sld [smem:[#allocation0]]
  $region110: #{tpu_custom_call.1} parent=0
    _
  %s25 = ssub.s32 1, %s23
  %s26 = scalar_select 0, %s25, %s23
  $region1: #{tpu_custom_call.1} parent=0
    #allocation5 [shape = 'u8[65536]{0}', space=vmem, size = 0x10000, scoped, tag = 'output window, operand 0, single buffered']
    #allocation6 [shape = 's32[1]{0}', space=sflag, size = 0x4, scoped, tag = 'scoped memory for tpu_custom_call.1']
    #allocation7 [shape = 'u8[4096]{0}', space=vmem, size = 0x1000, scoped, tag = 'output window, operand 1, single buffered']
    #allocation8 [shape = 's32[1]{0}', space=sflag, size = 0x4, scoped, tag = 'scoped memory for tpu_custom_call.1']
    #allocation9 [shape = 'u8[512]{0}', space=vmem, size = 0x400, scoped, tag = 'output window, operand 2, single buffered']
    %27 = vsyncpa [#allocation6], 0
    %28 = vsyncpa [#allocation8], 0
    // Predicated region
    $region2: #{tpu_custom_call.1} parent=1 // pred_check
      _
    $region3: #{tpu_custom_call.1} parent=1 // pred_check_branch
      %30 = sbr.rel (0) target = $region5
    $region4: #{tpu_custom_call.1} parent=1 // pred_region
      _
    $region5: #{tpu_custom_call.1} parent=1 // pred_fallthru
      _
    // Predicated region
    $region6: #{tpu_custom_call.1} parent=1 // pred_check
      _
    $region7: #{tpu_custom_call.1} parent=1 // pred_check_branch
      %32 = sbr.rel (0) target = $region9
    $region8: #{tpu_custom_call.1} parent=1 // pred_region
      _
    $region9: #{tpu_custom_call.1} parent=1 // pred_fallthru
      _
    // Predicated region
    $region10: #{tpu_custom_call.1} parent=1 // pred_check
      _
    $region11: #{tpu_custom_call.1} parent=1 // pred_check_branch
      %34 = sbr.rel (0) target = $region13
    $region12: #{tpu_custom_call.1} parent=1 // pred_region
      _
    $region13: #{tpu_custom_call.1} parent=1 // pred_fallthru
      _
    // Predicated region
    $region14: #{tpu_custom_call.1} parent=1 // pred_check
      _
    $region15: #{tpu_custom_call.1} parent=1 // pred_check_branch
      %36 = sbr.rel (0) target = $region17
    $region16: #{tpu_custom_call.1} parent=1 // pred_region
      _
    $region17: #{tpu_custom_call.1} parent=1 // pred_fallthru
      _
    // Predicated region
    $region18: #{tpu_custom_call.1} parent=1 // pred_check
      _
    $region19: #{tpu_custom_call.1} parent=1 // pred_check_branch
      %38 = sbr.rel (0) target = $region21
    $region20: #{tpu_custom_call.1} parent=1 // pred_region
      _
    $region21: #{tpu_custom_call.1} parent=1 // pred_fallthru
      _
    // Predicated region
    $region22: #{tpu_custom_call.1} parent=1 // pred_check
      _
    $region23: #{tpu_custom_call.1} parent=1 // pred_check_branch
      %40 = sbr.rel (0) target = $region25
    $region24: #{tpu_custom_call.1} parent=1 // pred_region
      _
    $region25: #{tpu_custom_call.1} parent=1 // pred_fallthru
      _
    // Predicated region
    $region26: #{tpu_custom_call.1} parent=1 // pred_check
      _
    $region27: #{tpu_custom_call.1} parent=1 // pred_check_branch
      %42 = sbr.rel (0) target = $region29
    $region28: #{tpu_custom_call.1} parent=1 // pred_region
      _
    $region29: #{tpu_custom_call.1} parent=1 // pred_fallthru
      _
    // Predicated region
    $region30: #{tpu_custom_call.1} parent=1 // pred_check
      _
    $region31: #{tpu_custom_call.1} parent=1 // pred_check_branch
      %44 = sbr.rel (0) target = $region33
    $region32: #{tpu_custom_call.1} parent=1 // pred_region
      _
    $region33: #{tpu_custom_call.1} parent=1 // pred_fallthru
      _
    // Predicated region
    $region34: #{tpu_custom_call.1} parent=1 // pred_check
      _
    $region35: #{tpu_custom_call.1} parent=1 // pred_check_branch
      %46 = sbr.rel (0) target = $region37
    $region36: #{tpu_custom_call.1} parent=1 // pred_region
      _
    $region37: #{tpu_custom_call.1} parent=1 // pred_fallthru
      _
    // Predicated region
    $region38: #{tpu_custom_call.1} parent=1 // pred_check
      _
    $region39: #{tpu_custom_call.1} parent=1 // pred_check_branch
      %48 = sbr.rel (0) target = $region41
    $region40: #{tpu_custom_call.1} parent=1 // pred_region
      _
    $region41: #{tpu_custom_call.1} parent=1 // pred_fallthru
      _
    // Predicated region
    $region42: #{tpu_custom_call.1} parent=1 // pred_check
      _
    $region43: #{tpu_custom_call.1} parent=1 // pred_check_branch
      %50 = sbr.rel (0) target = $region45
    $region44: #{tpu_custom_call.1} parent=1 // pred_region
      _
    $region45: #{tpu_custom_call.1} parent=1 // pred_fallthru
      _
    // Predicated region
    $region46: #{tpu_custom_call.1} parent=1 // pred_check
      _
    $region47: #{tpu_custom_call.1} parent=1 // pred_check_branch
      %52 = sbr.rel (0) target = $region49
    $region48: #{tpu_custom_call.1} parent=1 // pred_region
      _
    $region49: #{tpu_custom_call.1} parent=1 // pred_fallthru
      _
    // Predicated region
    $region50: #{tpu_custom_call.1} parent=1 // pred_check
      _
    $region51: #{tpu_custom_call.1} parent=1 // pred_check_branch
      %54 = sbr.rel (0) target = $region53
    $region52: #{tpu_custom_call.1} parent=1 // pred_region
      _
    $region53: #{tpu_custom_call.1} parent=1 // pred_fallthru
      _
    // Predicated region
    $region54: #{tpu_custom_call.1} parent=1 // pred_check
      _
    $region55: #{tpu_custom_call.1} parent=1 // pred_check_branch
      %56 = sbr.rel (0) target = $region57
    $region56: #{tpu_custom_call.1} parent=1 // pred_region
      _
    $region57: #{tpu_custom_call.1} parent=1 // pred_fallthru
      _
    // Predicated region
    $region58: #{tpu_custom_call.1} parent=1 // pred_check
      _
    $region59: #{tpu_custom_call.1} parent=1 // pred_check_branch
      %58 = sbr.rel (0) target = $region61
    $region60: #{tpu_custom_call.1} parent=1 // pred_region
      _
    $region61: #{tpu_custom_call.1} parent=1 // pred_fallthru
      _
    // Predicated region
    $region62: #{tpu_custom_call.1} parent=1 // pred_check
      _
    $region63: #{tpu_custom_call.1} parent=1 // pred_check_branch
      %60 = sbr.rel (0) target = $region65
    $region64: #{tpu_custom_call.1} parent=1 // pred_region
      _
    $region65: #{tpu_custom_call.1} parent=1 // pred_fallthru
      _
    // Predicated region
    $region66: #{tpu_custom_call.1} parent=1 // pred_check
      _
    $region67: #{tpu_custom_call.1} parent=1 // pred_check_branch
      %62 = sbr.rel (0) target = $region69
    $region68: #{tpu_custom_call.1} parent=1 // pred_region
      _
    $region69: #{tpu_custom_call.1} parent=1 // pred_fallthru
      _
    // Predicated region
    $region70: #{tpu_custom_call.1} parent=1 // pred_check
      _
    $region71: #{tpu_custom_call.1} parent=1 // pred_check_branch
      %64 = sbr.rel (0) target = $region73
    $region72: #{tpu_custom_call.1} parent=1 // pred_region
      _
    $region73: #{tpu_custom_call.1} parent=1 // pred_fallthru
      _
    // Predicated region
    $region74: #{tpu_custom_call.1} parent=1 // pred_check
      _
    $region75: #{tpu_custom_call.1} parent=1 // pred_check_branch
      %66 = sbr.rel (0) target = $region77
    $region76: #{tpu_custom_call.1} parent=1 // pred_region
      _
    $region77: #{tpu_custom_call.1} parent=1 // pred_fallthru
      _
    %p68 = scmp.eq.s32.totalorder 0, 0
    // Predicated region
    $region78: #{tpu_custom_call.1} parent=1 // pred_check
      %p69 = pneg %p68
    $region79: #{tpu_custom_call.1} parent=1 // pred_check_branch
      %71 = sbr.rel (%p69) target = $region81
    $region80: #{tpu_custom_call.1} parent=1 // pred_region
      %72 = vst [vmem:[#allocation2] sm:$0xff] 0.0
      %v73 = vld [vmem:[%s2] sm:$0xf]
      %v74 = vld [vmem:[%s4] sm:$0xf]
      %v75 = vld [vmem:[%s4 + $0x4] sm:$0xf]
      %v76 = vld [vmem:[%s4 + $0x8] sm:$0xf]
      %v77 = vld [vmem:[%s4 + $0xc] sm:$0xf]
      %v82 = vunpack.c.l.b16 %v74
      %v83 = vunpack.c.l.b16 %v75
      %v84 = vunpack.c.l.b16 %v76
      %v85 = vunpack.c.l.b16 %v77
      %v86 = vpack.c.b16 %v83, %v82
      %v87 = vpack.c.b16 %v85, %v84
      %vm90 = vcmask 261120
      %v92 = vsel %vm90, %v73, 0
      %94 = vmatprep.subr.bf16.mxu0 0
      %95 = vmatpush1.bf16.msra.mxu0 0
      %96 = vmatprep.subr.bf16.mxu0 0
      %97 = vmatpush1.bf16.msra.mxu0 0
      %98 = vmatprep.subr.bf16.mxu0 0
      %99 = vmatpush1.bf16.msra.mxu0 0
      %100 = vmatprep.subr.bf16.mxu0 0
      %101 = vmatpush1.bf16.msra.mxu0 0
      %102 = vmatprep.subr.bf16.mxu0 0
      %103 = vmatpush1.bf16.msra.mxu0 0
      %104 = vmatprep.subr.bf16.mxu0 0
      %105 = vmatpush1.bf16.msra.mxu0 0
      %106 = vmatprep.subr.bf16.mxu0 0
      %107 = vmatpush1.bf16.msra.mxu0 %v87
      %108 = vmatprep.subr.bf16.mxu0 0
      %109 = vmatpush1.bf16.msra.mxu0 %v86
      %110 = vmatprep.subr.bf16.mxu0 0
      %111 = vmatpush2.bf16.msra.mxu0 0
      %112 = vmatprep.subr.bf16.mxu0 0
      %113 = vmatpush2.bf16.msra.mxu0 0
      %114 = vmatprep.subr.bf16.mxu0 0
      %115 = vmatpush2.bf16.msra.mxu0 0
      %116 = vmatprep.subr.bf16.mxu0 0
      %117 = vmatpush2.bf16.msra.mxu0 0
      %118 = vmatprep.subr.bf16.mxu0 0
      %119 = vmatpush2.bf16.msra.mxu0 0
      %120 = vmatprep.subr.bf16.mxu0 0
      %121 = vmatpush2.bf16.msra.mxu0 0
      %122 = vmatprep.subr.bf16.mxu0 0
      %123 = vmatpush2.bf16.msra.mxu0 0
      %124 = vmatprep.subr.bf16.mxu0 0
      %125 = vmatpush2.bf16.msra.mxu0 0
      %126 = vmatprep.mubr.bf16.mxu0 0
      %127 = vmatmul.mubr.bf16.gmra.mxu0 %v92
      %v128 = vpop.f32.mrf.mxu0
      %v129 = vadd.f32 0.0, %v128
      %v130 = vpop.f32.mrf.mxu0
      %v131 = vpop.f32.mrf.mxu0
      %v132 = vpop.f32.mrf.mxu0
      %133 = vdwg.mxu0
      %v134 = vpack.c.bf16 %v129, %v129
      %vm135 = vcmask 257024
      %136 = vst.msk [vmem:[#allocation3] sm:$0xf] %vm135, %v134
      %v137 = vld [vmem:[%s5] sm:$0xf]
      %v138 = vld [vmem:[%s5 + $0x4] sm:$0xf]
      %v139 = vld [vmem:[%s5 + $0x8] sm:$0xf]
      %v140 = vld [vmem:[%s5 + $0xc] sm:$0xf]
      %v145 = vunpack.c.l.b16 %v137
      %v146 = vunpack.c.l.b16 %v138
      %v147 = vunpack.c.l.b16 %v139
      %v148 = vunpack.c.l.b16 %v140
      %v149 = vpack.c.b16 %v146, %v145
      %v150 = vpack.c.b16 %v148, %v147
      %153 = vmatprep.subr.bf16.mxu0 0
      %154 = vmatpush1.bf16.msra.mxu0 0
      %155 = vmatprep.subr.bf16.mxu0 0
      %156 = vmatpush1.bf16.msra.mxu0 0
      %157 = vmatprep.subr.bf16.mxu0 0
      %158 = vmatpush1.bf16.msra.mxu0 0
      %159 = vmatprep.subr.bf16.mxu0 0
      %160 = vmatpush1.bf16.msra.mxu0 0
      %161 = vmatprep.subr.bf16.mxu0 0
      %162 = vmatpush1.bf16.msra.mxu0 0
      %163 = vmatprep.subr.bf16.mxu0 0
      %164 = vmatpush1.bf16.msra.mxu0 0
      %165 = vmatprep.subr.bf16.mxu0 0
      %166 = vmatpush1.bf16.msra.mxu0 %v150
      %167 = vmatprep.subr.bf16.mxu0 0
      %168 = vmatpush1.bf16.msra.mxu0 %v149
      %169 = vmatprep.subr.bf16.mxu0 0
      %170 = vmatpush2.bf16.msra.mxu0 0
      %171 = vmatprep.subr.bf16.mxu0 0
      %172 = vmatpush2.bf16.msra.mxu0 0
      %173 = vmatprep.subr.bf16.mxu0 0
      %174 = vmatpush2.bf16.msra.mxu0 0
      %175 = vmatprep.subr.bf16.mxu0 0
      %176 = vmatpush2.bf16.msra.mxu0 0
      %177 = vmatprep.subr.bf16.mxu0 0
      %178 = vmatpush2.bf16.msra.mxu0 0
      %179 = vmatprep.subr.bf16.mxu0 0
      %180 = vmatpush2.bf16.msra.mxu0 0
      %181 = vmatprep.subr.bf16.mxu0 0
      %182 = vmatpush2.bf16.msra.mxu0 0
      %183 = vmatprep.subr.bf16.mxu0 0
      %184 = vmatpush2.bf16.msra.mxu0 0
      %185 = vmatprep.mubr.bf16.mxu0 0
      %186 = vmatmul.mubr.bf16.gmra.mxu0 %v92
      %v187 = vpop.f32.mrf.mxu0
      %v188 = vadd.f32 0.0, %v187
      %v189 = vpop.f32.mrf.mxu0
      %v190 = vpop.f32.mrf.mxu0
      %v191 = vpop.f32.mrf.mxu0
      %192 = vdwg.mxu0
      %v193 = vpack.c.bf16 %v188, %v188
      %194 = vst.msk [vmem:[#allocation4] sm:$0xf] %vm135, %v193
    $region81: #{tpu_custom_call.1} parent=1 // pred_fallthru
      _
    %v195 = vlaneseq
    %v196 = vshrl.u32 %v195, 7
    %v197 = vld [vmem:[%s0] sm:$0x1]
    %v198 = vlaneseq
    %v199 = vshrl.u32 %v198, 7
    %v200 = vsub.s32 0, %v199
    %v201 = vrot.slane %v197, %v200
    %vm202 = vcmp.eq.s32.totalorder %v196, %v201
    %v203 = vsel %vm202, 1, 0
    %v204 = vcvt.s32.f32 %v203
    %v205 = vpack.c.bf16 %v204, %v204
    %v206 = vld [vmem:[%s1] sm:$0x1]
    %v207 = vlaneseq
    %v208 = vshrl.u32 %v207, 7
    %v209 = vsub.s32 0, %v208
    %v210 = vrot.slane %v206, %v209
    %vm211 = vcmp.eq.s32.totalorder %v196, %v210
    %v212 = vsel %vm211, 1, 0
    %v213 = vcvt.s32.f32 %v212
    %v214 = vpack.c.bf16 %v213, %v213
    %v215 = vld [vmem:[#allocation3] sm:$0xf]
    %v216 = vld [vmem:[#allocation4] sm:$0xf]
    %217 = vxpose.xlu0.c.b16.start [1/8] %v214, 128
    %218 = vxpose.xlu0.c.b16.cont [2/8] 0, 128
    %219 = vxpose.xlu0.c.b16.cont [3/8] 0, 128
    %220 = vxpose.xlu0.c.b16.cont [4/8] 0, 128
    %221 = vxpose.xlu0.c.b16.cont [5/8] 0, 128
    %222 = vxpose.xlu0.c.b16.cont [6/8] 0, 128
    %223 = vxpose.xlu0.c.b16.cont [7/8] 0, 128
    %224 = vxpose.xlu0.c.b16.end [8/8] 0, 128
    %v225 = vpop.trf.xlu0
    %v226 = vpop.trf.xlu0
    %v227 = vpop.trf.xlu0
    %v228 = vpop.trf.xlu0
    %v229 = vpop.trf.xlu0
    %v230 = vpop.trf.xlu0
    %v231 = vpop.trf.xlu0
    %v232 = vpop.trf.xlu0
    %vm233 = vcmask 64512
    %v235 = vsel %vm233, %v225, 0
    %v238 = vsel %vm233, %v226, 0
    %v241 = vsel %vm233, %v227, 0
    %v244 = vsel %vm233, %v228, 0
    %v247 = vsel %vm233, %v229, 0
    %v250 = vsel %vm233, %v230, 0
    %v253 = vsel %vm233, %v231, 0
    %v256 = vsel %vm233, %v232, 0
    %vm258 = vcmask 1043456
    %v260 = vsel %vm258, %v216, 0
    %262 = vmatprep.subr.bf16.mxu0 0
    %263 = vmatpush1.bf16.msra.mxu0 0
    %264 = vmatprep.subr.bf16.mxu0 0
    %265 = vmatpush1.bf16.msra.mxu0 0
    %266 = vmatprep.subr.bf16.mxu0 0
    %267 = vmatpush1.bf16.msra.mxu0 0
    %268 = vmatprep.subr.bf16.mxu0 0
    %269 = vmatpush1.bf16.msra.mxu0 0
    %270 = vmatprep.subr.bf16.mxu0 0
    %271 = vmatpush1.bf16.msra.mxu0 0
    %272 = vmatprep.subr.bf16.mxu0 0
    %273 = vmatpush1.bf16.msra.mxu0 0
    %274 = vmatprep.subr.bf16.mxu0 0
    %275 = vmatpush1.bf16.msra.mxu0 0
    %276 = vmatprep.subr.bf16.mxu0 0
    %277 = vmatpush1.bf16.msra.mxu0 %v260
    %278 = vmatprep.subr.bf16.mxu0 0
    %279 = vmatpush2.bf16.msra.mxu0 0
    %280 = vmatprep.subr.bf16.mxu0 0
    %281 = vmatpush2.bf16.msra.mxu0 0
    %282 = vmatprep.subr.bf16.mxu0 0
    %283 = vmatpush2.bf16.msra.mxu0 0
    %284 = vmatprep.subr.bf16.mxu0 0
    %285 = vmatpush2.bf16.msra.mxu0 0
    %286 = vmatprep.subr.bf16.mxu0 0
    %287 = vmatpush2.bf16.msra.mxu0 0
    %288 = vmatprep.subr.bf16.mxu0 0
    %289 = vmatpush2.bf16.msra.mxu0 0
    %290 = vmatprep.subr.bf16.mxu0 0
    %291 = vmatpush2.bf16.msra.mxu0 0
    %292 = vmatprep.subr.bf16.mxu0 0
    %293 = vmatpush2.bf16.msra.mxu0 0
    %294 = vmatprep.mubr.bf16.mxu0 0
    %295 = vmatmul.mubr.bf16.gmra.mxu0 %v235
    %v296 = vpop.f32.mrf.mxu0
    %v297 = vadd.f32 0.0, %v296
    %v298 = vpop.f32.mrf.mxu0
    %v299 = vpop.f32.mrf.mxu0
    %v300 = vadd.f32 0.0, %v299
    %v301 = vpop.f32.mrf.mxu0
    %302 = vmatprep.mubr.bf16.mxu0 0
    %303 = vmatmul.mubr.bf16.gmra.mxu0 %v238
    %v304 = vpop.f32.mrf.mxu0
    %v305 = vadd.f32 0.0, %v304
    %v306 = vpop.f32.mrf.mxu0
    %v307 = vpop.f32.mrf.mxu0
    %v308 = vadd.f32 0.0, %v307
    %v309 = vpop.f32.mrf.mxu0
    %310 = vmatprep.mubr.bf16.mxu0 0
    %311 = vmatmul.mubr.bf16.gmra.mxu0 %v241
    %v312 = vpop.f32.mrf.mxu0
    %v313 = vadd.f32 0.0, %v312
    %v314 = vpop.f32.mrf.mxu0
    %v315 = vpop.f32.mrf.mxu0
    %v316 = vadd.f32 0.0, %v315
    %v317 = vpop.f32.mrf.mxu0
    %318 = vmatprep.mubr.bf16.mxu0 0
    %319 = vmatmul.mubr.bf16.gmra.mxu0 %v244
    %v320 = vpop.f32.mrf.mxu0
    %v321 = vadd.f32 0.0, %v320
    %v322 = vpop.f32.mrf.mxu0
    %v323 = vpop.f32.mrf.mxu0
    %v324 = vadd.f32 0.0, %v323
    %v325 = vpop.f32.mrf.mxu0
    %326 = vmatprep.mubr.bf16.mxu0 0
    %327 = vmatmul.mubr.bf16.gmra.mxu0 %v247
    %v328 = vpop.f32.mrf.mxu0
    %v329 = vadd.f32 0.0, %v328
    %v330 = vpop.f32.mrf.mxu0
    %v331 = vpop.f32.mrf.mxu0
    %v332 = vadd.f32 0.0, %v331
    %v333 = vpop.f32.mrf.mxu0
    %334 = vmatprep.mubr.bf16.mxu0 0
    %335 = vmatmul.mubr.bf16.gmra.mxu0 %v250
    %v336 = vpop.f32.mrf.mxu0
    %v337 = vadd.f32 0.0, %v336
    %v338 = vpop.f32.mrf.mxu0
    %v339 = vpop.f32.mrf.mxu0
    %v340 = vadd.f32 0.0, %v339
    %v341 = vpop.f32.mrf.mxu0
    %342 = vmatprep.mubr.bf16.mxu0 0
    %343 = vmatmul.mubr.bf16.gmra.mxu0 %v253
    %v344 = vpop.f32.mrf.mxu0
    %v345 = vadd.f32 0.0, %v344
    %v346 = vpop.f32.mrf.mxu0
    %v347 = vpop.f32.mrf.mxu0
    %v348 = vadd.f32 0.0, %v347
    %v349 = vpop.f32.mrf.mxu0
    %350 = vmatprep.mubr.bf16.mxu0 0
    %351 = vmatmul.mubr.bf16.gmra.mxu0 %v256
    %v352 = vpop.f32.mrf.mxu0
    %v353 = vadd.f32 0.0, %v352
    %v354 = vpop.f32.mrf.mxu0
    %v355 = vpop.f32.mrf.mxu0
    %v356 = vadd.f32 0.0, %v355
    %v357 = vpop.f32.mrf.mxu0
    %358 = vdwg.mxu0
    %359 = vxpose.xlu0.c.b16.start [1/8] %v205, 128
    %360 = vxpose.xlu0.c.b16.cont [2/8] 0, 128
    %361 = vxpose.xlu0.c.b16.cont [3/8] 0, 128
    %362 = vxpose.xlu0.c.b16.cont [4/8] 0, 128
    %363 = vxpose.xlu0.c.b16.cont [5/8] 0, 128
    %364 = vxpose.xlu0.c.b16.cont [6/8] 0, 128
    %365 = vxpose.xlu0.c.b16.cont [7/8] 0, 128
    %366 = vxpose.xlu0.c.b16.end [8/8] 0, 128
    %v367 = vpop.trf.xlu0
    %v368 = vpop.trf.xlu0
    %v369 = vpop.trf.xlu0
    %v370 = vpop.trf.xlu0
    %v371 = vpop.trf.xlu0
    %v372 = vpop.trf.xlu0
    %v373 = vpop.trf.xlu0
    %v374 = vpop.trf.xlu0
    %v376 = vsel %vm233, %v367, 0
    %v379 = vsel %vm233, %v368, 0
    %v382 = vsel %vm233, %v369, 0
    %v385 = vsel %vm233, %v370, 0
    %v388 = vsel %vm233, %v371, 0
    %v391 = vsel %vm233, %v372, 0
    %v394 = vsel %vm233, %v373, 0
    %v397 = vsel %vm233, %v374, 0
    %v400 = vsel %vm258, %v215, 0
    %402 = vmatprep.subr.bf16.mxu0 0
    %403 = vmatpush1.bf16.msra.mxu0 0
    %404 = vmatprep.subr.bf16.mxu0 0
    %405 = vmatpush1.bf16.msra.mxu0 0
    %406 = vmatprep.subr.bf16.mxu0 0
    %407 = vmatpush1.bf16.msra.mxu0 0
    %408 = vmatprep.subr.bf16.mxu0 0
    %409 = vmatpush1.bf16.msra.mxu0 0
    %410 = vmatprep.subr.bf16.mxu0 0
    %411 = vmatpush1.bf16.msra.mxu0 0
    %412 = vmatprep.subr.bf16.mxu0 0
    %413 = vmatpush1.bf16.msra.mxu0 0
    %414 = vmatprep.subr.bf16.mxu0 0
    %415 = vmatpush1.bf16.msra.mxu0 0
    %416 = vmatprep.subr.bf16.mxu0 0
    %417 = vmatpush1.bf16.msra.mxu0 %v400
    %418 = vmatprep.subr.bf16.mxu0 0
    %419 = vmatpush2.bf16.msra.mxu0 0
    %420 = vmatprep.subr.bf16.mxu0 0
    %421 = vmatpush2.bf16.msra.mxu0 0
    %422 = vmatprep.subr.bf16.mxu0 0
    %423 = vmatpush2.bf16.msra.mxu0 0
    %424 = vmatprep.subr.bf16.mxu0 0
    %425 = vmatpush2.bf16.msra.mxu0 0
    %426 = vmatprep.subr.bf16.mxu0 0
    %427 = vmatpush2.bf16.msra.mxu0 0
    %428 = vmatprep.subr.bf16.mxu0 0
    %429 = vmatpush2.bf16.msra.mxu0 0
    %430 = vmatprep.subr.bf16.mxu0 0
    %431 = vmatpush2.bf16.msra.mxu0 0
    %432 = vmatprep.subr.bf16.mxu0 0
    %433 = vmatpush2.bf16.msra.mxu0 0
    %434 = vmatprep.mubr.bf16.mxu0 0
    %435 = vmatmul.mubr.bf16.gmra.mxu0 %v376
    %v436 = vpop.f32.mrf.mxu0
    %v437 = vadd.f32 %v297, %v436
    %v438 = vpop.f32.mrf.mxu0
    %v439 = vpop.f32.mrf.mxu0
    %v440 = vadd.f32 %v300, %v439
    %v441 = vpop.f32.mrf.mxu0
    %442 = vmatprep.mubr.bf16.mxu0 0
    %443 = vmatmul.mubr.bf16.gmra.mxu0 %v379
    %v444 = vpop.f32.mrf.mxu0
    %v445 = vadd.f32 %v305, %v444
    %v446 = vpop.f32.mrf.mxu0
    %v447 = vpop.f32.mrf.mxu0
    %v448 = vadd.f32 %v308, %v447
    %v449 = vpop.f32.mrf.mxu0
    %450 = vmatprep.mubr.bf16.mxu0 0
    %451 = vmatmul.mubr.bf16.gmra.mxu0 %v382
    %v452 = vpop.f32.mrf.mxu0
    %v453 = vadd.f32 %v313, %v452
    %v454 = vpop.f32.mrf.mxu0
    %v455 = vpop.f32.mrf.mxu0
    %v456 = vadd.f32 %v316, %v455
    %v457 = vpop.f32.mrf.mxu0
    %458 = vmatprep.mubr.bf16.mxu0 0
    %459 = vmatmul.mubr.bf16.gmra.mxu0 %v385
    %v460 = vpop.f32.mrf.mxu0
    %v461 = vadd.f32 %v321, %v460
    %v462 = vpop.f32.mrf.mxu0
    %v463 = vpop.f32.mrf.mxu0
    %v464 = vadd.f32 %v324, %v463
    %v465 = vpop.f32.mrf.mxu0
    %466 = vmatprep.mubr.bf16.mxu0 0
    %467 = vmatmul.mubr.bf16.gmra.mxu0 %v388
    %v468 = vpop.f32.mrf.mxu0
    %v469 = vadd.f32 %v329, %v468
    %v470 = vpop.f32.mrf.mxu0
    %v471 = vpop.f32.mrf.mxu0
    %v472 = vadd.f32 %v332, %v471
    %v473 = vpop.f32.mrf.mxu0
    %474 = vmatprep.mubr.bf16.mxu0 0
    %475 = vmatmul.mubr.bf16.gmra.mxu0 %v391
    %v476 = vpop.f32.mrf.mxu0
    %v477 = vadd.f32 %v337, %v476
    %v478 = vpop.f32.mrf.mxu0
    %v479 = vpop.f32.mrf.mxu0
    %v480 = vadd.f32 %v340, %v479
    %v481 = vpop.f32.mrf.mxu0
    %482 = vmatprep.mubr.bf16.mxu0 0
    %483 = vmatmul.mubr.bf16.gmra.mxu0 %v394
    %v484 = vpop.f32.mrf.mxu0
    %v485 = vadd.f32 %v345, %v484
    %v486 = vpop.f32.mrf.mxu0
    %v487 = vpop.f32.mrf.mxu0
    %v488 = vadd.f32 %v348, %v487
    %v489 = vpop.f32.mrf.mxu0
    %490 = vmatprep.mubr.bf16.mxu0 0
    %491 = vmatmul.mubr.bf16.gmra.mxu0 %v397
    %v492 = vpop.f32.mrf.mxu0
    %v493 = vadd.f32 %v353, %v492
    %v494 = vpop.f32.mrf.mxu0
    %v495 = vpop.f32.mrf.mxu0
    %v496 = vadd.f32 %v356, %v495
    %v497 = vpop.f32.mrf.mxu0
    %498 = vdwg.mxu0
    %v499 = vld [vmem:[%s3] sm:$0xf]
    %v500 = vld [vmem:[%s3 + $0x4] sm:$0xf]
    %v501 = vld [vmem:[%s3 + $0x8] sm:$0xf]
    %v502 = vld [vmem:[%s3 + $0xc] sm:$0xf]
    %v503 = vld [vmem:[%s3 + $0x10] sm:$0xf]
    %v504 = vld [vmem:[%s3 + $0x14] sm:$0xf]
    %v505 = vld [vmem:[%s3 + $0x18] sm:$0xf]
    %v506 = vld [vmem:[%s3 + $0x1c] sm:$0xf]
    %v507 = vld [vmem:[%s3 + $0x20] sm:$0xf]
    %v508 = vld [vmem:[%s3 + $0x24] sm:$0xf]
    %v509 = vld [vmem:[%s3 + $0x28] sm:$0xf]
    %v510 = vld [vmem:[%s3 + $0x2c] sm:$0xf]
    %v511 = vld [vmem:[%s3 + $0x30] sm:$0xf]
    %v512 = vld [vmem:[%s3 + $0x34] sm:$0xf]
    %v513 = vld [vmem:[%s3 + $0x38] sm:$0xf]
    %v514 = vld [vmem:[%s3 + $0x3c] sm:$0xf]
    %v515 = vld [vmem:[%s6] sm:$0xf]
    %v516 = vld [vmem:[%s6 + $0x4] sm:$0xf]
    %v533 = vunpack.c.l.b16 %v499
    %v534 = vunpack.c.l.b16 %v500
    %v535 = vunpack.c.l.b16 %v501
    %v536 = vunpack.c.l.b16 %v502
    %v537 = vunpack.c.l.b16 %v503
    %v538 = vunpack.c.l.b16 %v504
    %v539 = vunpack.c.l.b16 %v505
    %v540 = vunpack.c.l.b16 %v506
    %v541 = vunpack.c.l.b16 %v507
    %v542 = vunpack.c.l.b16 %v508
    %v543 = vunpack.c.l.b16 %v509
    %v544 = vunpack.c.l.b16 %v510
    %v545 = vunpack.c.l.b16 %v511
    %v546 = vunpack.c.l.b16 %v512
    %v547 = vunpack.c.l.b16 %v513
    %v548 = vunpack.c.l.b16 %v514
    %v549 = vpack.c.b16 %v534, %v533
    %v550 = vpack.c.b16 %v536, %v535
    %v551 = vpack.c.b16 %v538, %v537
    %v552 = vpack.c.b16 %v540, %v539
    %v553 = vpack.c.b16 %v542, %v541
    %v554 = vpack.c.b16 %v544, %v543
    %v555 = vpack.c.b16 %v546, %v545
    %v556 = vpack.c.b16 %v548, %v547
    %v559 = vunpack.c.l.b16 %v515
    %v560 = vunpack.c.l.b16 %v516
    %v561 = vpack.c.b16 %v560, %v559
    %vm563 = vcmask 130048
    %v565 = vsel %vm563, %v549, 0
    %v568 = vsel %vm563, %v550, 0
    %v571 = vsel %vm563, %v551, 0
    %v574 = vsel %vm563, %v552, 0
    %v577 = vsel %vm563, %v553, 0
    %v580 = vsel %vm563, %v554, 0
    %v583 = vsel %vm563, %v555, 0
    %v586 = vsel %vm563, %v556, 0
    %588 = vmatprep.subr.bf16.mxu0 0
    %589 = vmatpush1.bf16.msra.mxu0 0
    %590 = vmatprep.subr.bf16.mxu0 0
    %591 = vmatpush1.bf16.msra.mxu0 0
    %592 = vmatprep.subr.bf16.mxu0 0
    %593 = vmatpush1.bf16.msra.mxu0 0
    %594 = vmatprep.subr.bf16.mxu0 0
    %595 = vmatpush1.bf16.msra.mxu0 0
    %596 = vmatprep.subr.bf16.mxu0 0
    %597 = vmatpush1.bf16.msra.mxu0 0
    %598 = vmatprep.subr.bf16.mxu0 0
    %599 = vmatpush1.bf16.msra.mxu0 0
    %600 = vmatprep.subr.bf16.mxu0 0
    %601 = vmatpush1.bf16.msra.mxu0 0
    %602 = vmatprep.subr.bf16.mxu0 0
    %603 = vmatpush1.bf16.msra.mxu0 %v561
    %604 = vmatprep.subr.bf16.mxu0 0
    %605 = vmatpush2.bf16.msra.mxu0 0
    %606 = vmatprep.subr.bf16.mxu0 0
    %607 = vmatpush2.bf16.msra.mxu0 0
    %608 = vmatprep.subr.bf16.mxu0 0
    %609 = vmatpush2.bf16.msra.mxu0 0
    %610 = vmatprep.subr.bf16.mxu0 0
    %611 = vmatpush2.bf16.msra.mxu0 0
    %612 = vmatprep.subr.bf16.mxu0 0
    %613 = vmatpush2.bf16.msra.mxu0 0
    %614 = vmatprep.subr.bf16.mxu0 0
    %615 = vmatpush2.bf16.msra.mxu0 0
    %616 = vmatprep.subr.bf16.mxu0 0
    %617 = vmatpush2.bf16.msra.mxu0 0
    %618 = vmatprep.subr.bf16.mxu0 0
    %619 = vmatpush2.bf16.msra.mxu0 0
    %620 = vmatprep.mubr.bf16.mxu0 0
    %621 = vmatmul.mubr.bf16.gmra.mxu0 %v565
    %v622 = vpop.f32.mrf.mxu0
    %v623 = vadd.f32 0.0, %v622
    %v624 = vpop.f32.mrf.mxu0
    %v625 = vpop.f32.mrf.mxu0
    %v626 = vadd.f32 0.0, %v625
    %v627 = vpop.f32.mrf.mxu0
    %628 = vmatprep.mubr.bf16.mxu0 0
    %629 = vmatmul.mubr.bf16.gmra.mxu0 %v568
    %v630 = vpop.f32.mrf.mxu0
    %v631 = vadd.f32 0.0, %v630
    %v632 = vpop.f32.mrf.mxu0
    %v633 = vpop.f32.mrf.mxu0
    %v634 = vadd.f32 0.0, %v633
    %v635 = vpop.f32.mrf.mxu0
    %636 = vmatprep.mubr.bf16.mxu0 0
    %637 = vmatmul.mubr.bf16.gmra.mxu0 %v571
    %v638 = vpop.f32.mrf.mxu0
    %v639 = vadd.f32 0.0, %v638
    %v640 = vpop.f32.mrf.mxu0
    %v641 = vpop.f32.mrf.mxu0
    %v642 = vadd.f32 0.0, %v641
    %v643 = vpop.f32.mrf.mxu0
    %644 = vmatprep.mubr.bf16.mxu0 0
    %645 = vmatmul.mubr.bf16.gmra.mxu0 %v574
    %v646 = vpop.f32.mrf.mxu0
    %v647 = vadd.f32 0.0, %v646
    %v648 = vpop.f32.mrf.mxu0
    %v649 = vpop.f32.mrf.mxu0
    %v650 = vadd.f32 0.0, %v649
    %v651 = vpop.f32.mrf.mxu0
    %652 = vmatprep.mubr.bf16.mxu0 0
    %653 = vmatmul.mubr.bf16.gmra.mxu0 %v577
    %v654 = vpop.f32.mrf.mxu0
    %v655 = vadd.f32 0.0, %v654
    %v656 = vpop.f32.mrf.mxu0
    %v657 = vpop.f32.mrf.mxu0
    %v658 = vadd.f32 0.0, %v657
    %v659 = vpop.f32.mrf.mxu0
    %660 = vmatprep.mubr.bf16.mxu0 0
    %661 = vmatmul.mubr.bf16.gmra.mxu0 %v580
    %v662 = vpop.f32.mrf.mxu0
    %v663 = vadd.f32 0.0, %v662
    %v664 = vpop.f32.mrf.mxu0
    %v665 = vpop.f32.mrf.mxu0
    %v666 = vadd.f32 0.0, %v665
    %v667 = vpop.f32.mrf.mxu0
    %668 = vmatprep.mubr.bf16.mxu0 0
    %669 = vmatmul.mubr.bf16.gmra.mxu0 %v583
    %v670 = vpop.f32.mrf.mxu0
    %v671 = vadd.f32 0.0, %v670
    %v672 = vpop.f32.mrf.mxu0
    %v673 = vpop.f32.mrf.mxu0
    %v674 = vadd.f32 0.0, %v673
    %v675 = vpop.f32.mrf.mxu0
    %676 = vmatprep.mubr.bf16.mxu0 0
    %677 = vmatmul.mubr.bf16.gmra.mxu0 %v586
    %v678 = vpop.f32.mrf.mxu0
    %v679 = vadd.f32 0.0, %v678
    %v680 = vpop.f32.mrf.mxu0
    %v681 = vpop.f32.mrf.mxu0
    %v682 = vadd.f32 0.0, %v681
    %v683 = vpop.f32.mrf.mxu0
    %684 = vdwg.mxu0
    %v685 = vadd.f32 %v437, %v623
    %v686 = vadd.f32 %v440, %v626
    %v687 = vadd.f32 %v445, %v631
    %v688 = vadd.f32 %v448, %v634
    %v689 = vadd.f32 %v453, %v639
    %v690 = vadd.f32 %v456, %v642
    %v691 = vadd.f32 %v461, %v647
    %v692 = vadd.f32 %v464, %v650
    %v693 = vadd.f32 %v469, %v655
    %v694 = vadd.f32 %v472, %v658
    %v695 = vadd.f32 %v477, %v663
    %v696 = vadd.f32 %v480, %v666
    %v697 = vadd.f32 %v485, %v671
    %v698 = vadd.f32 %v488, %v674
    %v699 = vadd.f32 %v493, %v679
    %v700 = vadd.f32 %v496, %v682
    %v701 = vld [vmem:[%s7] sm:$0x1]
    %v703 = vlaneseq
    %v704 = vshrl.u32 %v703, 7
    %v705 = vsub.s32 0, %v704
    %v706 = vrot.slane %v701, %v705
    %v708 = vadd.f32 %v685, %v706
    %v709 = vadd.f32 %v686, %v706
    %v710 = vadd.f32 %v687, %v706
    %v711 = vadd.f32 %v688, %v706
    %v712 = vadd.f32 %v689, %v706
    %v713 = vadd.f32 %v690, %v706
    %v714 = vadd.f32 %v691, %v706
    %v715 = vadd.f32 %v692, %v706
    %v716 = vadd.f32 %v693, %v706
    %v717 = vadd.f32 %v694, %v706
    %v718 = vadd.f32 %v695, %v706
    %v719 = vadd.f32 %v696, %v706
    %v720 = vadd.f32 %v697, %v706
    %v721 = vadd.f32 %v698, %v706
    %v722 = vadd.f32 %v699, %v706
    %v723 = vadd.f32 %v700, %v706
    %v724 = vmax.f32 %v708, 0.0
    %v725 = vmax.f32 %v709, 0.0
    %v726 = vmax.f32 %v710, 0.0
    %v727 = vmax.f32 %v711, 0.0
    %v728 = vmax.f32 %v712, 0.0
    %v729 = vmax.f32 %v713, 0.0
    %v730 = vmax.f32 %v714, 0.0
    %v731 = vmax.f32 %v715, 0.0
    %v732 = vmax.f32 %v716, 0.0
    %v733 = vmax.f32 %v717, 0.0
    %v734 = vmax.f32 %v718, 0.0
    %v735 = vmax.f32 %v719, 0.0
    %v736 = vmax.f32 %v720, 0.0
    %v737 = vmax.f32 %v721, 0.0
    %v738 = vmax.f32 %v722, 0.0
    %v739 = vmax.f32 %v723, 0.0
    %v740 = vpack.c.bf16 %v725, %v724
    %v741 = vpack.c.bf16 %v727, %v726
    %v742 = vpack.c.bf16 %v729, %v728
    %v743 = vpack.c.bf16 %v731, %v730
    %v744 = vpack.c.bf16 %v733, %v732
    %v745 = vpack.c.bf16 %v735, %v734
    %v746 = vpack.c.bf16 %v737, %v736
    %v747 = vpack.c.bf16 %v739, %v738
    %v748 = vld [vmem:[%s8] sm:$0xf]
    %v749 = vld [vmem:[%s8 + $0x4] sm:$0xf]
    %v750 = vld [vmem:[%s8 + $0x8] sm:$0xf]
    %v751 = vld [vmem:[%s8 + $0xc] sm:$0xf]
    %v752 = vld [vmem:[%s9] sm:$0x1]
    %v754 = vlaneseq
    %v755 = vshrl.u32 %v754, 7
    %v756 = vsub.s32 0, %v755
    %v757 = vrot.slane %v752, %v756
    %v763 = vunpack.c.l.b16 %v748
    %v764 = vunpack.c.l.b16 %v749
    %v765 = vunpack.c.l.b16 %v750
    %v766 = vunpack.c.l.b16 %v751
    %v767 = vpack.c.b16 %v764, %v763
    %v768 = vpack.c.b16 %v766, %v765
    %vm771 = vcmask 261120
    %v773 = vsel %vm771, %v740, 0
    %v776 = vsel %vm771, %v741, 0
    %v779 = vsel %vm771, %v742, 0
    %v782 = vsel %vm771, %v743, 0
    %v785 = vsel %vm771, %v744, 0
    %v788 = vsel %vm771, %v745, 0
    %v791 = vsel %vm771, %v746, 0
    %v794 = vsel %vm771, %v747, 0
    %796 = vmatprep.subr.bf16.mxu0 0
    %797 = vmatpush1.bf16.msra.mxu0 0
    %798 = vmatprep.subr.bf16.mxu0 0
    %799 = vmatpush1.bf16.msra.mxu0 0
    %800 = vmatprep.subr.bf16.mxu0 0
    %801 = vmatpush1.bf16.msra.mxu0 0
    %802 = vmatprep.subr.bf16.mxu0 0
    %803 = vmatpush1.bf16.msra.mxu0 0
    %804 = vmatprep.subr.bf16.mxu0 0
    %805 = vmatpush1.bf16.msra.mxu0 0
    %806 = vmatprep.subr.bf16.mxu0 0
    %807 = vmatpush1.bf16.msra.mxu0 0
    %808 = vmatprep.subr.bf16.mxu0 0
    %809 = vmatpush1.bf16.msra.mxu0 %v768
    %810 = vmatprep.subr.bf16.mxu0 0
    %811 = vmatpush1.bf16.msra.mxu0 %v767
    %812 = vmatprep.subr.bf16.mxu0 0
    %813 = vmatpush2.bf16.msra.mxu0 0
    %814 = vmatprep.subr.bf16.mxu0 0
    %815 = vmatpush2.bf16.msra.mxu0 0
    %816 = vmatprep.subr.bf16.mxu0 0
    %817 = vmatpush2.bf16.msra.mxu0 0
    %818 = vmatprep.subr.bf16.mxu0 0
    %819 = vmatpush2.bf16.msra.mxu0 0
    %820 = vmatprep.subr.bf16.mxu0 0
    %821 = vmatpush2.bf16.msra.mxu0 0
    %822 = vmatprep.subr.bf16.mxu0 0
    %823 = vmatpush2.bf16.msra.mxu0 0
    %824 = vmatprep.subr.bf16.mxu0 0
    %825 = vmatpush2.bf16.msra.mxu0 0
    %826 = vmatprep.subr.bf16.mxu0 0
    %827 = vmatpush2.bf16.msra.mxu0 0
    %828 = vmatprep.mubr.bf16.mxu0 0
    %829 = vmatmul.mubr.bf16.gmra.mxu0 %v773
    %v830 = vpop.f32.mrf.mxu0
    %v831 = vadd.f32 %v757, %v830
    %v832 = vpop.f32.mrf.mxu0
    %v833 = vpop.f32.mrf.mxu0
    %v834 = vadd.f32 %v757, %v833
    %v835 = vpop.f32.mrf.mxu0
    %836 = vmatprep.mubr.bf16.mxu0 0
    %837 = vmatmul.mubr.bf16.gmra.mxu0 %v776
    %v838 = vpop.f32.mrf.mxu0
    %v839 = vadd.f32 %v757, %v838
    %v840 = vpop.f32.mrf.mxu0
    %v841 = vpop.f32.mrf.mxu0
    %v842 = vadd.f32 %v757, %v841
    %v843 = vpop.f32.mrf.mxu0
    %844 = vmatprep.mubr.bf16.mxu0 0
    %845 = vmatmul.mubr.bf16.gmra.mxu0 %v779
    %v846 = vpop.f32.mrf.mxu0
    %v847 = vadd.f32 %v757, %v846
    %v848 = vpop.f32.mrf.mxu0
    %v849 = vpop.f32.mrf.mxu0
    %v850 = vadd.f32 %v757, %v849
    %v851 = vpop.f32.mrf.mxu0
    %852 = vmatprep.mubr.bf16.mxu0 0
    %853 = vmatmul.mubr.bf16.gmra.mxu0 %v782
    %v854 = vpop.f32.mrf.mxu0
    %v855 = vadd.f32 %v757, %v854
    %v856 = vpop.f32.mrf.mxu0
    %v857 = vpop.f32.mrf.mxu0
    %v858 = vadd.f32 %v757, %v857
    %v859 = vpop.f32.mrf.mxu0
    %860 = vmatprep.mubr.bf16.mxu0 0
    %861 = vmatmul.mubr.bf16.gmra.mxu0 %v785
    %v862 = vpop.f32.mrf.mxu0
    %v863 = vadd.f32 %v757, %v862
    %v864 = vpop.f32.mrf.mxu0
    %v865 = vpop.f32.mrf.mxu0
    %v866 = vadd.f32 %v757, %v865
    %v867 = vpop.f32.mrf.mxu0
    %868 = vmatprep.mubr.bf16.mxu0 0
    %869 = vmatmul.mubr.bf16.gmra.mxu0 %v788
    %v870 = vpop.f32.mrf.mxu0
    %v871 = vadd.f32 %v757, %v870
    %v872 = vpop.f32.mrf.mxu0
    %v873 = vpop.f32.mrf.mxu0
    %v874 = vadd.f32 %v757, %v873
    %v875 = vpop.f32.mrf.mxu0
    %876 = vmatprep.mubr.bf16.mxu0 0
    %877 = vmatmul.mubr.bf16.gmra.mxu0 %v791
    %v878 = vpop.f32.mrf.mxu0
    %v879 = vadd.f32 %v757, %v878
    %v880 = vpop.f32.mrf.mxu0
    %v881 = vpop.f32.mrf.mxu0
    %v882 = vadd.f32 %v757, %v881
    %v883 = vpop.f32.mrf.mxu0
    %884 = vmatprep.mubr.bf16.mxu0 0
    %885 = vmatmul.mubr.bf16.gmra.mxu0 %v794
    %v886 = vpop.f32.mrf.mxu0
    %v887 = vadd.f32 %v757, %v886
    %v888 = vpop.f32.mrf.mxu0
    %v889 = vpop.f32.mrf.mxu0
    %v890 = vadd.f32 %v757, %v889
    %v891 = vpop.f32.mrf.mxu0
    %892 = vdwg.mxu0
    %893 = vst [vmem:[#allocation5] sm:$0xff] %v831
    %894 = vst [vmem:[#allocation5 + $0x8] sm:$0xff] %v834
    %895 = vst [vmem:[#allocation5 + $0x10] sm:$0xff] %v839
    %896 = vst [vmem:[#allocation5 + $0x18] sm:$0xff] %v842
    %897 = vst [vmem:[#allocation5 + $0x20] sm:$0xff] %v847
    %898 = vst [vmem:[#allocation5 + $0x28] sm:$0xff] %v850
    %899 = vst [vmem:[#allocation5 + $0x30] sm:$0xff] %v855
    %900 = vst [vmem:[#allocation5 + $0x38] sm:$0xff] %v858
    %901 = vst [vmem:[#allocation5 + $0x40] sm:$0xff] %v863
    %902 = vst [vmem:[#allocation5 + $0x48] sm:$0xff] %v866
    %903 = vst [vmem:[#allocation5 + $0x50] sm:$0xff] %v871
    %904 = vst [vmem:[#allocation5 + $0x58] sm:$0xff] %v874
    %905 = vst [vmem:[#allocation5 + $0x60] sm:$0xff] %v879
    %906 = vst [vmem:[#allocation5 + $0x68] sm:$0xff] %v882
    %907 = vst [vmem:[#allocation5 + $0x70] sm:$0xff] %v887
    %908 = vst [vmem:[#allocation5 + $0x78] sm:$0xff] %v890
    %v909 = vld [vmem:[#allocation2] sm:$0xff]
    %v910 = vpack.c.bf16 %v834, %v831
    %v911 = vpack.c.bf16 %v842, %v839
    %v912 = vpack.c.bf16 %v850, %v847
    %v913 = vpack.c.bf16 %v858, %v855
    %v914 = vpack.c.bf16 %v866, %v863
    %v915 = vpack.c.bf16 %v874, %v871
    %v916 = vpack.c.bf16 %v882, %v879
    %v917 = vpack.c.bf16 %v890, %v887
    %918 = vmatprep.subr.bf16.mxu0 0
    %919 = vmatpush1.bf16.msra.mxu0 %v917
    %920 = vmatprep.subr.bf16.mxu0 0
    %921 = vmatpush1.bf16.msra.mxu0 %v916
    %922 = vmatprep.subr.bf16.mxu0 0
    %923 = vmatpush1.bf16.msra.mxu0 %v915
    %924 = vmatprep.subr.bf16.mxu0 0
    %925 = vmatpush1.bf16.msra.mxu0 %v914
    %926 = vmatprep.subr.bf16.mxu0 0
    %927 = vmatpush1.bf16.msra.mxu0 %v913
    %928 = vmatprep.subr.bf16.mxu0 0
    %929 = vmatpush1.bf16.msra.mxu0 %v912
    %930 = vmatprep.subr.bf16.mxu0 0
    %931 = vmatpush1.bf16.msra.mxu0 %v911
    %932 = vmatprep.subr.bf16.mxu0 0
    %933 = vmatpush1.bf16.msra.mxu0 %v910
    %934 = vmatprep.subr.bf16.mxu0 0
    %935 = vmatpush2.bf16.msra.mxu0 0
    %936 = vmatprep.subr.bf16.mxu0 0
    %937 = vmatpush2.bf16.msra.mxu0 0
    %938 = vmatprep.subr.bf16.mxu0 0
    %939 = vmatpush2.bf16.msra.mxu0 0
    %940 = vmatprep.subr.bf16.mxu0 0
    %941 = vmatpush2.bf16.msra.mxu0 0
    %942 = vmatprep.subr.bf16.mxu0 0
    %943 = vmatpush2.bf16.msra.mxu0 0
    %944 = vmatprep.subr.bf16.mxu0 0
    %945 = vmatpush2.bf16.msra.mxu0 0
    %946 = vmatprep.subr.bf16.mxu0 0
    %947 = vmatpush2.bf16.msra.mxu0 0
    %948 = vmatprep.subr.bf16.mxu0 0
    %949 = vmatpush2.bf16.msra.mxu0 0
    %950 = vmatprep.mubr.bf16.mxu0 0
    %951 = vmatmul.mubr.bf16.gmra.mxu0 %v214
    %v952 = vpop.f32.mrf.mxu0
    %v953 = vadd.f32 0.0, %v952
    %v954 = vpop.f32.mrf.mxu0
    %v955 = vpop.f32.mrf.mxu0
    %v956 = vpop.f32.mrf.mxu0
    %957 = vdwg.mxu0
    %v958 = vadd.f32 %v909, %v953
    %959 = vst [vmem:[#allocation2] sm:$0xff] %v958
    // Predicated region
    $region82: #{tpu_custom_call.1} parent=1 // pred_check
      %p960 = pneg %p68
    $region83: #{tpu_custom_call.1} parent=1 // pred_check_branch
      %962 = sbr.rel (%p960) target = $region85
    $region84: #{tpu_custom_call.1} parent=1 // pred_region
      %v963 = vld [vmem:[%s2] sm:$0xf]
      %v964 = vld [vmem:[%s10] sm:$0xf]
      %v965 = vld [vmem:[%s10 + $0x4] sm:$0xf]
      %v966 = vld [vmem:[%s10 + $0x8] sm:$0xf]
      %v967 = vld [vmem:[%s10 + $0xc] sm:$0xf]
      %v968 = vld [vmem:[#allocation2] sm:$0xff]
      %v969 = vpack.c.bf16 %v968, %v968
      %v970 = vld [vmem:[%s11] sm:$0xf]
      %v971 = vld [vmem:[%s11 + $0x4] sm:$0xf]
      %v972 = vld [vmem:[%s11 + $0x8] sm:$0xf]
      %v973 = vld [vmem:[%s11 + $0xc] sm:$0xf]
      %v974 = vld [vmem:[%s11 + $0x10] sm:$0xf]
      %v975 = vld [vmem:[%s11 + $0x14] sm:$0xf]
      %v976 = vld [vmem:[%s11 + $0x18] sm:$0xf]
      %v977 = vld [vmem:[%s11 + $0x1c] sm:$0xf]
      %v978 = vld [vmem:[%s11 + $0x20] sm:$0xf]
      %v979 = vld [vmem:[%s11 + $0x24] sm:$0xf]
      %v980 = vld [vmem:[%s11 + $0x28] sm:$0xf]
      %v981 = vld [vmem:[%s11 + $0x2c] sm:$0xf]
      %v982 = vld [vmem:[%s11 + $0x30] sm:$0xf]
      %v983 = vld [vmem:[%s11 + $0x34] sm:$0xf]
      %v984 = vld [vmem:[%s11 + $0x38] sm:$0xf]
      %v985 = vld [vmem:[%s11 + $0x3c] sm:$0xf]
      %v1002 = vunpack.c.l.b16 %v970
      %v1003 = vunpack.c.l.b16 %v971
      %v1004 = vunpack.c.l.b16 %v972
      %v1005 = vunpack.c.l.b16 %v973
      %v1006 = vunpack.c.l.b16 %v974
      %v1007 = vunpack.c.l.b16 %v975
      %v1008 = vunpack.c.l.b16 %v976
      %v1009 = vunpack.c.l.b16 %v977
      %v1010 = vunpack.c.l.b16 %v978
      %v1011 = vunpack.c.l.b16 %v979
      %v1012 = vunpack.c.l.b16 %v980
      %v1013 = vunpack.c.l.b16 %v981
      %v1014 = vunpack.c.l.b16 %v982
      %v1015 = vunpack.c.l.b16 %v983
      %v1016 = vunpack.c.l.b16 %v984
      %v1017 = vunpack.c.l.b16 %v985
      %v1018 = vpack.c.b16 %v1003, %v1002
      %v1019 = vpack.c.b16 %v1005, %v1004
      %v1020 = vpack.c.b16 %v1007, %v1006
      %v1021 = vpack.c.b16 %v1009, %v1008
      %v1022 = vpack.c.b16 %v1011, %v1010
      %v1023 = vpack.c.b16 %v1013, %v1012
      %v1024 = vpack.c.b16 %v1015, %v1014
      %v1025 = vpack.c.b16 %v1017, %v1016
      %1034 = vmatprep.subr.bf16.mxu0 0
      %1035 = vmatpush1.bf16.msra.mxu0 %v1025
      %1036 = vmatprep.subr.bf16.mxu0 0
      %1037 = vmatpush1.bf16.msra.mxu0 %v1024
      %1038 = vmatprep.subr.bf16.mxu0 0
      %1039 = vmatpush1.bf16.msra.mxu0 %v1023
      %1040 = vmatprep.subr.bf16.mxu0 0
      %1041 = vmatpush1.bf16.msra.mxu0 %v1022
      %1042 = vmatprep.subr.bf16.mxu0 0
      %1043 = vmatpush1.bf16.msra.mxu0 %v1021
      %1044 = vmatprep.subr.bf16.mxu0 0
      %1045 = vmatpush1.bf16.msra.mxu0 %v1020
      %1046 = vmatprep.subr.bf16.mxu0 0
      %1047 = vmatpush1.bf16.msra.mxu0 %v1019
      %1048 = vmatprep.subr.bf16.mxu0 0
      %1049 = vmatpush1.bf16.msra.mxu0 %v1018
      %1050 = vmatprep.subr.bf16.mxu0 0
      %1051 = vmatpush2.bf16.msra.mxu0 0
      %1052 = vmatprep.subr.bf16.mxu0 0
      %1053 = vmatpush2.bf16.msra.mxu0 0
      %1054 = vmatprep.subr.bf16.mxu0 0
      %1055 = vmatpush2.bf16.msra.mxu0 0
      %1056 = vmatprep.subr.bf16.mxu0 0
      %1057 = vmatpush2.bf16.msra.mxu0 0
      %1058 = vmatprep.subr.bf16.mxu0 0
      %1059 = vmatpush2.bf16.msra.mxu0 0
      %1060 = vmatprep.subr.bf16.mxu0 0
      %1061 = vmatpush2.bf16.msra.mxu0 0
      %1062 = vmatprep.subr.bf16.mxu0 0
      %1063 = vmatpush2.bf16.msra.mxu0 0
      %1064 = vmatprep.subr.bf16.mxu0 0
      %1065 = vmatpush2.bf16.msra.mxu0 0
      %1066 = vmatprep.mubr.bf16.mxu0 0
      %1067 = vmatmul.mubr.bf16.gmra.mxu0 %v969
      %v1068 = vpop.f32.mrf.mxu0
      %v1069 = vadd.f32 0.0, %v1068
      %v1070 = vpop.f32.mrf.mxu0
      %v1071 = vpop.f32.mrf.mxu0
      %v1072 = vpop.f32.mrf.mxu0
      %1073 = vdwg.mxu0
      %v1078 = vunpack.c.l.b16 %v964
      %v1079 = vunpack.c.l.b16 %v965
      %v1080 = vunpack.c.l.b16 %v966
      %v1081 = vunpack.c.l.b16 %v967
      %v1082 = vpack.c.b16 %v1079, %v1078
      %v1083 = vpack.c.b16 %v1081, %v1080
      %v1087 = vsel %vm771, %v963, 0
      %1089 = vmatprep.subr.bf16.mxu0 0
      %1090 = vmatpush1.bf16.msra.mxu0 0
      %1091 = vmatprep.subr.bf16.mxu0 0
      %1092 = vmatpush1.bf16.msra.mxu0 0
      %1093 = vmatprep.subr.bf16.mxu0 0
      %1094 = vmatpush1.bf16.msra.mxu0 0
      %1095 = vmatprep.subr.bf16.mxu0 0
      %1096 = vmatpush1.bf16.msra.mxu0 0
      %1097 = vmatprep.subr.bf16.mxu0 0
      %1098 = vmatpush1.bf16.msra.mxu0 0
      %1099 = vmatprep.subr.bf16.mxu0 0
      %1100 = vmatpush1.bf16.msra.mxu0 0
      %1101 = vmatprep.subr.bf16.mxu0 0
      %1102 = vmatpush1.bf16.msra.mxu0 %v1083
      %1103 = vmatprep.subr.bf16.mxu0 0
      %1104 = vmatpush1.bf16.msra.mxu0 %v1082
      %1105 = vmatprep.subr.bf16.mxu0 0
      %1106 = vmatpush2.bf16.msra.mxu0 0
      %1107 = vmatprep.subr.bf16.mxu0 0
      %1108 = vmatpush2.bf16.msra.mxu0 0
      %1109 = vmatprep.subr.bf16.mxu0 0
      %1110 = vmatpush2.bf16.msra.mxu0 0
      %1111 = vmatprep.subr.bf16.mxu0 0
      %1112 = vmatpush2.bf16.msra.mxu0 0
      %1113 = vmatprep.subr.bf16.mxu0 0
      %1114 = vmatpush2.bf16.msra.mxu0 0
      %1115 = vmatprep.subr.bf16.mxu0 0
      %1116 = vmatpush2.bf16.msra.mxu0 0
      %1117 = vmatprep.subr.bf16.mxu0 0
      %1118 = vmatpush2.bf16.msra.mxu0 0
      %1119 = vmatprep.subr.bf16.mxu0 0
      %1120 = vmatpush2.bf16.msra.mxu0 0
      %1121 = vmatprep.mubr.bf16.mxu0 0
      %1122 = vmatmul.mubr.bf16.gmra.mxu0 %v1087
      %v1123 = vpop.f32.mrf.mxu0
      %v1124 = vadd.f32 %v1069, %v1123
      %v1125 = vpop.f32.mrf.mxu0
      %v1126 = vpop.f32.mrf.mxu0
      %v1127 = vpop.f32.mrf.mxu0
      %1128 = vdwg.mxu0
      %v1129 = vld [vmem:[%s12] sm:$0x1]
      %v1131 = vlaneseq
      %v1132 = vshrl.u32 %v1131, 7
      %v1133 = vsub.s32 0, %v1132
      %v1134 = vrot.slane %v1129, %v1133
      %v1136 = vadd.f32 %v1124, %v1134
      %v1137 = vmax.f32 %v1136, 0.0
      %v1138 = vpack.c.bf16 %v1137, %v1137
      %v1139 = vld [vmem:[%s13] sm:$0xf]
      %v1140 = vld [vmem:[%s13 + $0x4] sm:$0xf]
      %v1141 = vld [vmem:[%s13 + $0x8] sm:$0xf]
      %v1142 = vld [vmem:[%s13 + $0xc] sm:$0xf]
      %v1143 = vld [vmem:[%s14] sm:$0x1]
      %v1145 = vlaneseq
      %v1146 = vshrl.u32 %v1145, 7
      %v1147 = vsub.s32 0, %v1146
      %v1148 = vrot.slane %v1143, %v1147
      %v1154 = vunpack.c.l.b16 %v1139
      %v1155 = vunpack.c.l.b16 %v1140
      %v1156 = vunpack.c.l.b16 %v1141
      %v1157 = vunpack.c.l.b16 %v1142
      %v1158 = vpack.c.b16 %v1155, %v1154
      %v1159 = vpack.c.b16 %v1157, %v1156
      %v1163 = vsel %vm771, %v1138, 0
      %1165 = vmatprep.subr.bf16.mxu0 0
      %1166 = vmatpush1.bf16.msra.mxu0 0
      %1167 = vmatprep.subr.bf16.mxu0 0
      %1168 = vmatpush1.bf16.msra.mxu0 0
      %1169 = vmatprep.subr.bf16.mxu0 0
      %1170 = vmatpush1.bf16.msra.mxu0 0
      %1171 = vmatprep.subr.bf16.mxu0 0
      %1172 = vmatpush1.bf16.msra.mxu0 0
      %1173 = vmatprep.subr.bf16.mxu0 0
      %1174 = vmatpush1.bf16.msra.mxu0 0
      %1175 = vmatprep.subr.bf16.mxu0 0
      %1176 = vmatpush1.bf16.msra.mxu0 0
      %1177 = vmatprep.subr.bf16.mxu0 0
      %1178 = vmatpush1.bf16.msra.mxu0 %v1159
      %1179 = vmatprep.subr.bf16.mxu0 0
      %1180 = vmatpush1.bf16.msra.mxu0 %v1158
      %1181 = vmatprep.subr.bf16.mxu0 0
      %1182 = vmatpush2.bf16.msra.mxu0 0
      %1183 = vmatprep.subr.bf16.mxu0 0
      %1184 = vmatpush2.bf16.msra.mxu0 0
      %1185 = vmatprep.subr.bf16.mxu0 0
      %1186 = vmatpush2.bf16.msra.mxu0 0
      %1187 = vmatprep.subr.bf16.mxu0 0
      %1188 = vmatpush2.bf16.msra.mxu0 0
      %1189 = vmatprep.subr.bf16.mxu0 0
      %1190 = vmatpush2.bf16.msra.mxu0 0
      %1191 = vmatprep.subr.bf16.mxu0 0
      %1192 = vmatpush2.bf16.msra.mxu0 0
      %1193 = vmatprep.subr.bf16.mxu0 0
      %1194 = vmatpush2.bf16.msra.mxu0 0
      %1195 = vmatprep.subr.bf16.mxu0 0
      %1196 = vmatpush2.bf16.msra.mxu0 0
      %1197 = vmatprep.mubr.bf16.mxu0 0
      %1198 = vmatmul.mubr.bf16.gmra.mxu0 %v1163
      %v1199 = vpop.f32.mrf.mxu0
      %v1200 = vadd.f32 %v1148, %v1199
      %v1201 = vpop.f32.mrf.mxu0
      %v1202 = vpop.f32.mrf.mxu0
      %v1203 = vpop.f32.mrf.mxu0
      %1204 = vdwg.mxu0
      %1205 = vst.msk [vmem:[#allocation7] sm:$0xff] %vm771, %v1200
      %v1206 = vsel %vm771, %v1200, 0.0
      %v1207 = vrot.slane %v1206, 4
      %v1208 = vadd.f32 %v1206, %v1207
      %v1209 = vrot.slane %v1208, 2
      %v1210 = vadd.f32 %v1208, %v1209
      %v1211 = vrot.slane %v1210, 1
      %v1212 = vadd.f32 %v1210, %v1211
      %v1213 = vrcp.pop 8.0
      %v1214 = vmul.f32 %v1212, %v1213
      %v1215 = vld [vmem:[%s18] sm:$0x1]
      %v1216 = vld [vmem:[%s15] sm:$0xf]
      %v1217 = vpack.c.bf16 %v1214, %v1214
      %v1218 = vld [vmem:[%s16] sm:$0xf]
      %v1219 = vld [vmem:[%s16 + $0x4] sm:$0xf]
      %v1220 = vld [vmem:[%s16 + $0x8] sm:$0xf]
      %v1221 = vld [vmem:[%s16 + $0xc] sm:$0xf]
      %v1226 = vunpack.c.l.b16 %v1218
      %v1227 = vunpack.c.l.b16 %v1219
      %v1228 = vunpack.c.l.b16 %v1220
      %v1229 = vunpack.c.l.b16 %v1221
      %v1230 = vpack.c.b16 %v1227, %v1226
      %v1231 = vpack.c.b16 %v1229, %v1228
      %v1235 = vsel %vm771, %v1217, 0
      %1237 = vmatprep.subr.bf16.mxu0 0
      %1238 = vmatpush1.bf16.msra.mxu0 0
      %1239 = vmatprep.subr.bf16.mxu0 0
      %1240 = vmatpush1.bf16.msra.mxu0 0
      %1241 = vmatprep.subr.bf16.mxu0 0
      %1242 = vmatpush1.bf16.msra.mxu0 0
      %1243 = vmatprep.subr.bf16.mxu0 0
      %1244 = vmatpush1.bf16.msra.mxu0 0
      %1245 = vmatprep.subr.bf16.mxu0 0
      %1246 = vmatpush1.bf16.msra.mxu0 0
      %1247 = vmatprep.subr.bf16.mxu0 0
      %1248 = vmatpush1.bf16.msra.mxu0 0
      %1249 = vmatprep.subr.bf16.mxu0 0
      %1250 = vmatpush1.bf16.msra.mxu0 %v1231
      %1251 = vmatprep.subr.bf16.mxu0 0
      %1252 = vmatpush1.bf16.msra.mxu0 %v1230
      %1253 = vmatprep.subr.bf16.mxu0 0
      %1254 = vmatpush2.bf16.msra.mxu0 0
      %1255 = vmatprep.subr.bf16.mxu0 0
      %1256 = vmatpush2.bf16.msra.mxu0 0
      %1257 = vmatprep.subr.bf16.mxu0 0
      %1258 = vmatpush2.bf16.msra.mxu0 0
      %1259 = vmatprep.subr.bf16.mxu0 0
      %1260 = vmatpush2.bf16.msra.mxu0 0
      %1261 = vmatprep.subr.bf16.mxu0 0
      %1262 = vmatpush2.bf16.msra.mxu0 0
      %1263 = vmatprep.subr.bf16.mxu0 0
      %1264 = vmatpush2.bf16.msra.mxu0 0
      %1265 = vmatprep.subr.bf16.mxu0 0
      %1266 = vmatpush2.bf16.msra.mxu0 0
      %1267 = vmatprep.subr.bf16.mxu0 0
      %1268 = vmatpush2.bf16.msra.mxu0 0
      %1269 = vmatprep.mubr.bf16.mxu0 0
      %1270 = vmatmul.mubr.bf16.gmra.mxu0 %v1235
      %v1271 = vpop.f32.mrf.mxu0
      %v1272 = vadd.f32 0.0, %v1271
      %v1273 = vpop.f32.mrf.mxu0
      %v1274 = vpop.f32.mrf.mxu0
      %v1275 = vpop.f32.mrf.mxu0
      %1276 = vdwg.mxu0
      %v1278 = vsel %vm233, %v1215, 0
      %v1281 = vsel %vm258, %v1216, 0
      %1283 = vmatprep.subr.bf16.mxu0 0
      %1284 = vmatpush1.bf16.msra.mxu0 0
      %1285 = vmatprep.subr.bf16.mxu0 0
      %1286 = vmatpush1.bf16.msra.mxu0 0
      %1287 = vmatprep.subr.bf16.mxu0 0
      %1288 = vmatpush1.bf16.msra.mxu0 0
      %1289 = vmatprep.subr.bf16.mxu0 0
      %1290 = vmatpush1.bf16.msra.mxu0 0
      %1291 = vmatprep.subr.bf16.mxu0 0
      %1292 = vmatpush1.bf16.msra.mxu0 0
      %1293 = vmatprep.subr.bf16.mxu0 0
      %1294 = vmatpush1.bf16.msra.mxu0 0
      %1295 = vmatprep.subr.bf16.mxu0 0
      %1296 = vmatpush1.bf16.msra.mxu0 0
      %1297 = vmatprep.subr.bf16.mxu0 0
      %1298 = vmatpush1.bf16.msra.mxu0 %v1281
      %1299 = vmatprep.subr.bf16.mxu0 0
      %1300 = vmatpush2.bf16.msra.mxu0 0
      %1301 = vmatprep.subr.bf16.mxu0 0
      %1302 = vmatpush2.bf16.msra.mxu0 0
      %1303 = vmatprep.subr.bf16.mxu0 0
      %1304 = vmatpush2.bf16.msra.mxu0 0
      %1305 = vmatprep.subr.bf16.mxu0 0
      %1306 = vmatpush2.bf16.msra.mxu0 0
      %1307 = vmatprep.subr.bf16.mxu0 0
      %1308 = vmatpush2.bf16.msra.mxu0 0
      %1309 = vmatprep.subr.bf16.mxu0 0
      %1310 = vmatpush2.bf16.msra.mxu0 0
      %1311 = vmatprep.subr.bf16.mxu0 0
      %1312 = vmatpush2.bf16.msra.mxu0 0
      %1313 = vmatprep.subr.bf16.mxu0 0
      %1314 = vmatpush2.bf16.msra.mxu0 0
      %1315 = vmatprep.mubr.bf16.mxu0 0
      %1316 = vmatmul.mubr.bf16.gmra.mxu0 %v1278
      %v1317 = vpop.f32.mrf.mxu0
      %v1318 = vadd.f32 %v1272, %v1317
      %v1319 = vpop.f32.mrf.mxu0
      %v1320 = vpop.f32.mrf.mxu0
      %v1321 = vpop.f32.mrf.mxu0
      %1322 = vdwg.mxu0
      %v1323 = vld [vmem:[%s17] sm:$0x1]
      %v1324 = vadd.f32 %v1318, %v1323
      %v1325 = vmax.f32 %v1324, 0.0
      %vm1326 = vcmask 57344
      %1327 = vst.msk [vmem:[#allocation9] sm:$0x1] %vm1326, %v1325
    $region85: #{tpu_custom_call.1} parent=1 // pred_fallthru
      _
    // Predicated region
    $region86: #{tpu_custom_call.1} parent=1 // pred_check
      _
    $region87: #{tpu_custom_call.1} parent=1 // pred_check_branch
      %1329 = sbr.rel (0) target = $region89
    $region88: #{tpu_custom_call.1} parent=1 // pred_region
      %s1331 = ssub.s32 2048, 2048
      %1332 = vsyncadd [#allocation6], %s1331
      %s1333 = sshll.u32 [#allocation5], 4
      %s1334 = int_to_ptr.vmem [resolvable:$true] %s1333
      %1339 = dma.vmem_to_hbm [thread:$0]  %s1334, 2048, %s19, [#allocation6], 128, 128, 8
    $region89: #{tpu_custom_call.1} parent=1 // pred_fallthru
      _
    // Predicated region
    $region90: #{tpu_custom_call.1} parent=1 // pred_check
      _
    $region91: #{tpu_custom_call.1} parent=1 // pred_check_branch
      %1341 = sbr.rel (0) target = $region93
    $region92: #{tpu_custom_call.1} parent=1 // pred_region
      %s1343 = ssub.s32 128, 128
      %1344 = vsyncadd [#allocation8], %s1343
      %s1346 = sshll.u32 [#allocation7], 4
      %s1347 = int_to_ptr.vmem [resolvable:$true] %s1346
      %1349 = dma.vmem_to_hbm [thread:$0]  %s1347, 128, %s20, [#allocation8]
    $region93: #{tpu_custom_call.1} parent=1 // pred_fallthru
      _
    // Predicated region
    $region94: #{tpu_custom_call.1} parent=1 // pred_check
      _
    $region95: #{tpu_custom_call.1} parent=1 // pred_check_branch
      %1351 = sbr.rel (0) target = $region97
    $region96: #{tpu_custom_call.1} parent=1 // pred_region
      %s1353 = ssub.s32 16, 16
      %1354 = vsyncadd [#allocation8], %s1353
      %s1356 = sshll.u32 [#allocation9], 4
      %s1357 = int_to_ptr.vmem [resolvable:$true] %s1356
      %1359 = dma.vmem_to_hbm [thread:$0]  %s1357, 16, %s21, [#allocation8]
    $region97: #{tpu_custom_call.1} parent=1 // pred_fallthru
      _
    // Predicated region
    $region98: #{tpu_custom_call.1} parent=1 // pred_check
      _
    $region99: #{tpu_custom_call.1} parent=1 // pred_check_branch
      %1361 = sbr.rel (0) target = $region101
    $region100: #{tpu_custom_call.1} parent=1 // pred_region
      %1362 = dma.done [#allocation6], 2048
    $region101: #{tpu_custom_call.1} parent=1 // pred_fallthru
      _
    // Predicated region
    $region102: #{tpu_custom_call.1} parent=1 // pred_check
      _
    $region103: #{tpu_custom_call.1} parent=1 // pred_check_branch
      %1364 = sbr.rel (0) target = $region105
    $region104: #{tpu_custom_call.1} parent=1 // pred_region
      %1365 = dma.done [#allocation8], 128
    $region105: #{tpu_custom_call.1} parent=1 // pred_fallthru
      _
    // Predicated region
    $region106: #{tpu_custom_call.1} parent=1 // pred_check
      _
    $region107: #{tpu_custom_call.1} parent=1 // pred_check_branch
      %1367 = sbr.rel (0) target = $region109
    $region108: #{tpu_custom_call.1} parent=1 // pred_region
      %1368 = dma.done [#allocation8], 16
    $region109: #{tpu_custom_call.1} parent=1 // pred_fallthru
      _
    %1369 = vsyncpa [#allocation6], 1
    %1370 = vsyncpa [#allocation8], 1

</llo_original>
